<compile_context>
chip_gen: v5e
topology: v5e:2x2
jax: 0.10.0
libtpu: 0.0.40
codegen_flags: <defaults>
</compile_context>

<pallas_src>
import math

import jax
import jax.numpy as jnp
from jax.experimental import pallas as pl
from jax.experimental.pallas import tpu as pltpu

_LANE = 128
_ROW_ALIGN = 16          # bf16 sublane packing: keep dynamic row offsets 16-aligned


def _round_up(x, m):
    return (x + m - 1) // m * m


def _pad_gate_axis(w, h, h_pad, axis):
    """Pad the 3H gate axis [r|z|n] so each gate block is h_pad wide (zeros)."""
    if h_pad == h:
        return w
    chunks = jnp.split(w, 3, axis=axis)
    pad = [(0, 0)] * w.ndim
    pad[axis] = (0, h_pad - h)
    return jnp.concatenate([jnp.pad(c, pad) for c in chunks], axis=axis)


def _make_gru_kernel(seq_len, time_block, batch_pad, hidden_pad, guard_tail):
    """Build the fused projection + recurrence kernel for one GRU layer."""
    B, H = batch_pad, hidden_pad

    def kernel(x_ref, wih_ref, whh_ref, bfold_ref, bhn_ref,
               out_ref, hn_ref, h_scratch, gi_scratch):
        tb = pl.program_id(0)

        @pl.when(tb == 0)
        def _():
            h_scratch[...] = jnp.zeros_like(h_scratch)

        # ---- Fused input projection for the whole time block: one large
        # parallel matmul (M = time_block * batch_pad rows) off the serial
        # critical path.  r/z hidden biases are pre-folded into bfold.
        gi_scratch[...] = (
            jnp.dot(x_ref[...], wih_ref[...],
                    preferred_element_type=jnp.float32)
            + bfold_ref[...])

        # Grid-invariant operands (constant index_map -> stay resident).
        w_hh = whh_ref[...]                                    # (Hp, 3Hp) bf16
        b_hn = jnp.broadcast_to(bhn_ref[...], (B, H))          # hoisted, 1 copy

        def step(i, h):
            row = pl.multiple_of(i * B, _ROW_ALIGN)
            gi = gi_scratch[pl.ds(row, B), :]                  # (B, 3H) f32
            gh = jnp.dot(h.astype(jnp.bfloat16), w_hh,
                         preferred_element_type=jnp.float32)    # (B, 3H) f32
            r = jax.nn.sigmoid(gi[:, 0 * H:1 * H] + gh[:, 0 * H:1 * H])
            z = jax.nn.sigmoid(gi[:, 1 * H:2 * H] + gh[:, 1 * H:2 * H])
            n = jnp.tanh(gi[:, 2 * H:3 * H] + r * (gh[:, 2 * H:3 * H] + b_hn))
            h_new = (1.0 - z) * n + z * h
            if guard_tail:
                # Padded timesteps must not disturb the carried hidden state
                # (h_n is emitted from it on the last grid step).
                h_new = jnp.where(tb * time_block + i < seq_len, h_new, h)
            out_ref[pl.ds(row, B), :] = h_new.astype(out_ref.dtype)
            return h_new

        h_final = jax.lax.fori_loop(0, time_block, step, h_scratch[...],
                                    unroll=min(8, time_block))
        h_scratch[...] = h_final

        @pl.when(tb == pl.num_programs(0) - 1)
        def _():
            hn_ref[...] = h_final                              # (B, H) f32

    return kernel


def gru_layer(x_flat, w_ih_t, w_hh_t, b_fold, b_hn, *,
              seq_len, time_block, batch_pad):
    """One GRU layer.  x_flat: (Tp*Bp, in_dim) bf16 (time-major flat rows).

    Returns (out_flat (Tp*Bp, Hp) bf16, h_n (Bp, Hp) f32).
    """
    rows, in_dim = x_flat.shape
    Hp = w_hh_t.shape[0]
    Tp = rows // batch_pad
    assert Tp % time_block == 0
    n_blocks = Tp // time_block
    block_rows = time_block * batch_pad
    guard_tail = Tp > seq_len

    kernel = _make_gru_kernel(seq_len, time_block, batch_pad, Hp, guard_tail)

    # VMEM budget: double-buffered IO blocks + weights + f32 scratches; clamp
    # to 64 MiB so the same kernel is safe on v7x (64 MiB physical VMEM).
    est = (2 * block_rows * in_dim * 2          # x blocks (bf16, 2 bufs)
           + 2 * block_rows * Hp * 2            # out blocks (bf16, 2 bufs)
           + 2 * (in_dim + Hp) * 3 * Hp * 2     # W_ih, W_hh (bf16, 2 bufs)
           + block_rows * 3 * Hp * 4            # gi scratch (f32)
           + 3 * batch_pad * Hp * 4             # h scratch + h_n block
           + 2 * 4 * Hp * 4)                    # biases
    vmem_limit = int(min(max(2 * est, 32 * 1024 * 1024), 64 * 1024 * 1024))

    grid_spec = pltpu.PrefetchScalarGridSpec(
        num_scalar_prefetch=0,
        grid=(n_blocks,),
        in_specs=[
            pl.BlockSpec((block_rows, in_dim), lambda t: (t, 0)),   # x
            pl.BlockSpec((in_dim, 3 * Hp), lambda t: (0, 0)),       # W_ih^T
            pl.BlockSpec((Hp, 3 * Hp), lambda t: (0, 0)),           # W_hh^T
            pl.BlockSpec((1, 3 * Hp), lambda t: (0, 0)),            # b_fold
            pl.BlockSpec((1, Hp), lambda t: (0, 0)),                # b_hn
        ],
        out_specs=[
            pl.BlockSpec((block_rows, Hp), lambda t: (t, 0)),       # hidden
            pl.BlockSpec((batch_pad, Hp), lambda t: (0, 0)),        # h_n
        ],
        scratch_shapes=[
            pltpu.VMEM((batch_pad, Hp), jnp.float32),               # h carry
            pltpu.VMEM((block_rows, 3 * Hp), jnp.float32),          # gi block
        ],
    )

    out_flat, h_n = pl.pallas_call(
        kernel,
        out_shape=(jax.ShapeDtypeStruct((rows, Hp), jnp.bfloat16),
                   jax.ShapeDtypeStruct((batch_pad, Hp), jnp.float32)),
        grid_spec=grid_spec,
        compiler_params=pltpu.CompilerParams(
            dimension_semantics=("arbitrary",),      # serial recurrence in time
            vmem_limit_bytes=vmem_limit,
        ),
    )(x_flat, w_ih_t, w_hh_t, b_fold, b_hn)
    return out_flat, h_n


class BaseRNNPallas:
    """JAX/Pallas mirror of BaseRNN (GRU cell), eval-mode forward."""

    def __init__(self, vocab_size, embedding_size, hidden_size, n_layers,
                 embedding_dropout=0.5, rnn_dropout=0.5, rnn_cell_name='gru',
                 key=None):
        if rnn_cell_name.lower() != 'gru':
            # Base class also allows lstm/rnn; only the default GRU path here.
            raise ValueError('Unsupported RNN Cell: {0}'.format(rnn_cell_name))
        self.vocab_size = vocab_size
        self.embedding_size = embedding_size
        self.hidden_size = hidden_size
        self.hidden_pad = _round_up(hidden_size, _LANE)
        self.n_layers = n_layers
        self.embedding_dropout_rate = embedding_dropout
        self.rnn_dropout_rate = rnn_dropout

        key = jax.random.PRNGKey(0) if key is None else key
        k_emb, key = jax.random.split(key)
        # Embedding: N(0, 1) like nn.Embedding default init.
        self.embedding = jax.random.normal(
            k_emb, (vocab_size, embedding_size), dtype=jnp.float32)

        # GRU params: uniform(-1/sqrt(H), 1/sqrt(H)), PyTorch nn.GRU init.
        stdv = 1.0 / math.sqrt(hidden_size)
        H, Hp = hidden_size, self.hidden_pad
        self.layers_raw = []   # PyTorch-layout params (reference / export)
        self.layers = []       # kernel-ready padded, transposed, bf16 params
        for layer in range(n_layers):
            in_dim = embedding_size if layer == 0 else hidden_size
            k1, k2, k3, k4, key = jax.random.split(key, 5)
            w_ih = jax.random.uniform(k1, (3 * H, in_dim),
                                      minval=-stdv, maxval=stdv,
                                      dtype=jnp.float32)
            w_hh = jax.random.uniform(k2, (3 * H, H),
                                      minval=-stdv, maxval=stdv,
                                      dtype=jnp.float32)
            b_ih = jax.random.uniform(k3, (3 * H,), minval=-stdv, maxval=stdv,
                                      dtype=jnp.float32)
            b_hh = jax.random.uniform(k4, (3 * H,), minval=-stdv, maxval=stdv,
                                      dtype=jnp.float32)
            self.layers_raw.append((w_ih, w_hh, b_ih, b_hh))

            # Pre-transpose for x @ W, pad each gate block to Hp lanes.
            w_ih_t = _pad_gate_axis(w_ih.T, H, Hp, axis=1)    # (in_dim, 3Hp)
            if layer > 0:
                # input of deeper layers is the padded (Hp-wide) hidden state
                w_ih_t = jnp.pad(w_ih_t, ((0, Hp - H), (0, 0)))
            w_hh_t = _pad_gate_axis(w_hh.T, H, Hp, axis=1)    # (H, 3Hp)
            w_hh_t = jnp.pad(w_hh_t, ((0, Hp - H), (0, 0)))   # (Hp, 3Hp)

            b_ih_p = _pad_gate_axis(b_ih, H, Hp, axis=0)      # (3Hp,)
            b_hh_p = _pad_gate_axis(b_hh, H, Hp, axis=0)      # (3Hp,)
            # Fold r/z hidden biases into the parallel input projection;
            # the n-gate hidden bias must stay inside r*(...) in the kernel.
            b_fold = b_ih_p + jnp.concatenate(
                [b_hh_p[:2 * Hp], jnp.zeros((Hp,), jnp.float32)])
            b_hn = b_hh_p[2 * Hp:]

            self.layers.append((w_ih_t.astype(jnp.bfloat16),
                                w_hh_t.astype(jnp.bfloat16),
                                b_fold.reshape(1, 3 * Hp),
                                b_hn.reshape(1, Hp)))

    def forward(self, token_ids, time_block=32):
        """token_ids: (T, B) int32 -> (outputs (T, B, H), h_n (L, B, H))."""
        T, B = token_ids.shape
        H, Hp = self.hidden_size, self.hidden_pad
        E = self.embedding_size
        Bp = _round_up(max(B, _ROW_ALIGN), _ROW_ALIGN)
        tb_eff = max(1, min(time_block, T))
        Tp = _round_up(T, tb_eff)

        # Glue: embedding lookup; eval-mode dropout is identity.
        # TODO(synk): training-mode embedding/rnn dropout masks not implemented.
        x = jnp.take(self.embedding, token_ids, axis=0)         # (T, B, E)
        x = jnp.pad(x, ((0, Tp - T), (0, Bp - B), (0, 0)))      # (Tp, Bp, E)
        x = x.reshape(Tp * Bp, E).astype(jnp.bfloat16)          # flat, bf16

        h_last = []
        for (w_ih_t, w_hh_t, b_fold, b_hn) in self.layers:
            x, h_n_l = gru_layer(x, w_ih_t, w_hh_t, b_fold, b_hn,
                                 seq_len=T, time_block=tb_eff, batch_pad=Bp)
            h_last.append(h_n_l[:B, :H])
        outputs = x.reshape(Tp, Bp, Hp)[:T, :B, :H].astype(jnp.float32)
        h_n = jnp.stack(h_last, axis=0)                         # (L, B, H)
        return outputs, h_n


def _gru_reference(x_emb, layers_raw):
    """Pure-JAX reference mirroring the kernel's bf16/f32 numerics."""
    x = x_emb.astype(jnp.bfloat16)
    h_finals = []
    for (w_ih, w_hh, b_ih, b_hh) in layers_raw:
        H = w_hh.shape[1]
        T, B, _ = x.shape
        w_ih_t = w_ih.T.astype(jnp.bfloat16)
        w_hh_t = w_hh.T.astype(jnp.bfloat16)
        b_fold = b_ih + jnp.concatenate(
            [b_hh[:2 * H], jnp.zeros((H,), jnp.float32)])
        b_hn = b_hh[2 * H:]
        gi_all = jnp.dot(x.reshape(T * B, -1), w_ih_t,
                         preferred_element_type=jnp.float32)
        gi_all = gi_all.reshape(T, B, 3 * H) + b_fold

        def step(h, gi):
            gh = jnp.dot(h.astype(jnp.bfloat16), w_hh_t,
                         preferred_element_type=jnp.float32)
            r = jax.nn.sigmoid(gi[:, :H] + gh[:, :H])
            z = jax.nn.sigmoid(gi[:, H:2 * H] + gh[:, H:2 * H])
            n = jnp.tanh(gi[:, 2 * H:] + r * (gh[:, 2 * H:] + b_hn))
            h_new = (1.0 - z) * n + z * h
            return h_new, h_new.astype(jnp.bfloat16)   # stored hidden is bf16

        h0 = jnp.zeros((B, H), jnp.float32)
        h_T, outs = jax.lax.scan(step, h0, gi_all)
        h_finals.append(h_T)
        x = outs
    return x.astype(jnp.float32), jnp.stack(h_finals, axis=0)


if __name__ == "__main__":
    # Small shapes consistent with the module: vocab=20, embed=32, hidden=32,
    # n_layers=2, seq=8, batch=2.
    vocab_size, embedding_size, hidden_size, n_layers = 20, 32, 32, 2
    T, B = 8, 2

    key = jax.random.PRNGKey(0)
    k_tok, k_param = jax.random.split(key)
    token_ids = jax.random.randint(k_tok, (T, B), 0, vocab_size,
                                   dtype=jnp.int32)

    model = BaseRNNPallas(vocab_size, embedding_size, hidden_size, n_layers,
                          key=k_param)

    outputs, h_n = model.forward(token_ids)
    outputs = jax.block_until_ready(outputs)
    h_n = jax.block_until_ready(h_n)

    # Sanity-check against a pure-JAX reference with matching numerics.
    x_emb = jnp.take(model.embedding, token_ids, axis=0)
    ref_out, ref_hn = _gru_reference(x_emb, model.layers_raw)
    ref_out = jax.block_until_ready(ref_out)
    assert outputs.shape == (T, B, hidden_size)
    assert h_n.shape == (n_layers, B, hidden_size)
    assert jnp.max(jnp.abs(outputs - ref_out)) < 3e-3
    assert jnp.max(jnp.abs(h_n - ref_hn)) < 3e-3

    print("KERNEL_OK")
</pallas_src>

<mosaic_0001>
module attributes {stable_mosaic.version = 11 : i64} {
  func.func @kernel(%arg0: i32, %arg1: memref<128x32xbf16, #tpu.memory_space<vmem>>, %arg2: memref<32x384xbf16, #tpu.memory_space<vmem>>, %arg3: memref<128x384xbf16, #tpu.memory_space<vmem>>, %arg4: memref<1x384xf32, #tpu.memory_space<vmem>>, %arg5: memref<1x128xf32, #tpu.memory_space<vmem>>, %arg6: memref<128x128xbf16, #tpu.memory_space<vmem>>, %arg7: memref<16x128xf32, #tpu.memory_space<vmem>>, %arg8: memref<16x128xf32, #tpu.memory_space<vmem>>, %arg9: memref<128x384xf32, #tpu.memory_space<vmem>>) attributes {dimension_semantics = [#tpu.dimension_semantics<arbitrary>], iteration_bounds = array<i64: 1>, scalar_prefetch = 0 : i64, scratch_operands = 2 : i64, tpu.core_type = #tpu.core_type<tc>, window_params = [{transform_indices = @transform_0, window_bounds = array<i64: 128, 32>}, {pipeline_mode = #tpu.pipeline_mode<synchronous>, transform_indices = @transform_1, window_bounds = array<i64: 32, 384>}, {pipeline_mode = #tpu.pipeline_mode<synchronous>, transform_indices = @transform_2, window_bounds = array<i64: 128, 384>}, {pipeline_mode = #tpu.pipeline_mode<synchronous>, transform_indices = @transform_3, window_bounds = array<i64: 1, 384>}, {pipeline_mode = #tpu.pipeline_mode<synchronous>, transform_indices = @transform_4, window_bounds = array<i64: 1, 128>}, {transform_indices = @transform_5, window_bounds = array<i64: 128, 128>}, {pipeline_mode = #tpu.pipeline_mode<synchronous>, transform_indices = @transform_6, window_bounds = array<i64: 16, 128>}]} {
    %c0_i32 = arith.constant 0 : i32
    %0 = arith.cmpi eq, %arg0, %c0_i32 : i32
    %1 = arith.extui %0 : i1 to i32
    %c0_i32_0 = arith.constant 0 : i32
    %2 = arith.cmpi ne, %1, %c0_i32_0 : i32
    scf.if %2 {
      %cst_74 = arith.constant 0.000000e+00 : f32
      %307 = vector.broadcast %cst_74 : f32 to vector<16x128xf32>
      %c0_75 = arith.constant 0 : index
      %c0_76 = arith.constant 0 : index
      %308 = vector.load %arg8[%c0_75, %c0_76] : memref<16x128xf32, #tpu.memory_space<vmem>>, vector<16x128xf32>
      tpu.vector_store %arg8[%c0_75, %c0_76], %307 {strides = array<i32>} : memref<16x128xf32, #tpu.memory_space<vmem>>, vector<16x128xf32>,
    } else {
    }
    %c0 = arith.constant 0 : index
    %c0_1 = arith.constant 0 : index
    %3 = vector.load %arg1[%c0, %c0_1] : memref<128x32xbf16, #tpu.memory_space<vmem>>, vector<128x32xbf16>
    %c0_2 = arith.constant 0 : index
    %c0_3 = arith.constant 0 : index
    %4 = vector.load %arg2[%c0_2, %c0_3] : memref<32x384xbf16, #tpu.memory_space<vmem>>, vector<32x384xbf16>
    %cst = arith.constant dense<0.000000e+00> : vector<128x384xf32>
    %5 = tpu.matmul %3, %4, %cst {dimension_numbers = #tpu.dot_dimension_numbers<[1], [0], [0], [1], [0, 0, 1, 1], [], []>} : vector<128x32xbf16>, vector<32x384xbf16>, vector<128x384xf32> -> vector<128x384xf32>
    %c0_4 = arith.constant 0 : index
    %c0_5 = arith.constant 0 : index
    %6 = vector.load %arg4[%c0_4, %c0_5] : memref<1x384xf32, #tpu.memory_space<vmem>>, vector<1x384xf32>
    %7 = vector.broadcast %6 : vector<1x384xf32> to vector<128x384xf32>
    %8 = arith.addf %5, %7 : vector<128x384xf32>
    %c0_6 = arith.constant 0 : index
    %c0_7 = arith.constant 0 : index
    %9 = vector.load %arg9[%c0_6, %c0_7] : memref<128x384xf32, #tpu.memory_space<vmem>>, vector<128x384xf32>
    tpu.vector_store %arg9[%c0_6, %c0_7], %8 {strides = array<i32>} : memref<128x384xf32, #tpu.memory_space<vmem>>, vector<128x384xf32>,
    %c0_8 = arith.constant 0 : index
    %c0_9 = arith.constant 0 : index
    %10 = vector.load %arg3[%c0_8, %c0_9] : memref<128x384xbf16, #tpu.memory_space<vmem>>, vector<128x384xbf16>
    %c0_10 = arith.constant 0 : index
    %c0_11 = arith.constant 0 : index
    %11 = vector.load %arg5[%c0_10, %c0_11] : memref<1x128xf32, #tpu.memory_space<vmem>>, vector<1x128xf32>
    %12 = vector.shape_cast %11 : vector<1x128xf32> to vector<1x128xf32>
    %13 = vector.broadcast %12 : vector<1x128xf32> to vector<16x128xf32>
    %c0_12 = arith.constant 0 : index
    %c0_13 = arith.constant 0 : index
    %14 = vector.load %arg8[%c0_12, %c0_13] : memref<16x128xf32, #tpu.memory_space<vmem>>, vector<16x128xf32>
    %c0_i32_14 = arith.constant 0 : i32
    %c16_i32 = arith.constant 16 : i32
    %15 = arith.muli %c0_i32_14, %c16_i32 : i32
    %16 = tpu.assume_multiple %15, 16 : i32
    %17 = arith.index_cast %16 : i32 to index
    %c0_15 = arith.constant 0 : index
    %18 = vector.load %arg9[%17, %c0_15] : memref<128x384xf32, #tpu.memory_space<vmem>>, vector<16x384xf32>
    %19 = arith.truncf %14 : vector<16x128xf32> to vector<16x128xbf16>
    %cst_16 = arith.constant dense<0.000000e+00> : vector<16x384xf32>
    %20 = tpu.matmul %19, %10, %cst_16 {dimension_numbers = #tpu.dot_dimension_numbers<[1], [0], [0], [1], [0, 0, 1, 1], [], []>} : vector<16x128xbf16>, vector<128x384xbf16>, vector<16x384xf32> -> vector<16x384xf32>
    %21 = vector.extract_strided_slice %18 {offsets = [0, 0], sizes = [16, 128], strides = [1, 1]} : vector<16x384xf32> to vector<16x128xf32>
    %22 = vector.extract_strided_slice %20 {offsets = [0, 0], sizes = [16, 128], strides = [1, 1]} : vector<16x384xf32> to vector<16x128xf32>
    %23 = arith.addf %21, %22 : vector<16x128xf32>
    %24 = arith.negf %23 : vector<16x128xf32>
    %25 = math.exp %24 : vector<16x128xf32>
    %cst_17 = arith.constant 1.000000e+00 : f32
    %26 = vector.broadcast %cst_17 : f32 to vector<16x128xf32>
    %27 = arith.addf %26, %25 : vector<16x128xf32>
    %28 = arith.divf %26, %27 : vector<16x128xf32>
    %29 = vector.extract_strided_slice %18 {offsets = [0, 128], sizes = [16, 128], strides = [1, 1]} : vector<16x384xf32> to vector<16x128xf32>
    %30 = vector.extract_strided_slice %20 {offsets = [0, 128], sizes = [16, 128], strides = [1, 1]} : vector<16x384xf32> to vector<16x128xf32>
    %31 = arith.addf %29, %30 : vector<16x128xf32>
    %32 = arith.negf %31 : vector<16x128xf32>
    %33 = math.exp %32 : vector<16x128xf32>
    %cst_18 = arith.constant 1.000000e+00 : f32
    %34 = vector.broadcast %cst_18 : f32 to vector<16x128xf32>
    %35 = arith.addf %34, %33 : vector<16x128xf32>
    %36 = arith.divf %34, %35 : vector<16x128xf32>
    %37 = vector.extract_strided_slice %18 {offsets = [0, 256], sizes = [16, 128], strides = [1, 1]} : vector<16x384xf32> to vector<16x128xf32>
    %38 = vector.extract_strided_slice %20 {offsets = [0, 256], sizes = [16, 128], strides = [1, 1]} : vector<16x384xf32> to vector<16x128xf32>
    %39 = arith.addf %38, %13 : vector<16x128xf32>
    %40 = arith.mulf %28, %39 : vector<16x128xf32>
    %41 = arith.addf %37, %40 : vector<16x128xf32>
    %42 = math.tanh %41 : vector<16x128xf32>
    %cst_19 = arith.constant 1.000000e+00 : f32
    %43 = vector.broadcast %cst_19 : f32 to vector<16x128xf32>
    %44 = arith.subf %43, %36 : vector<16x128xf32>
    %45 = arith.mulf %44, %42 : vector<16x128xf32>
    %46 = arith.mulf %36, %14 : vector<16x128xf32>
    %47 = arith.addf %45, %46 : vector<16x128xf32>
    %48 = arith.truncf %47 : vector<16x128xf32> to vector<16x128xbf16>
    %49 = arith.index_cast %16 : i32 to index
    %c0_20 = arith.constant 0 : index
    %50 = vector.load %arg6[%49, %c0_20] : memref<128x128xbf16, #tpu.memory_space<vmem>>, vector<16x128xbf16>
    tpu.vector_store %arg6[%49, %c0_20], %48 {strides = array<i32>} : memref<128x128xbf16, #tpu.memory_space<vmem>>, vector<16x128xbf16>,
    %c1_i32 = arith.constant 1 : i32
    %c16_i32_21 = arith.constant 16 : i32
    %51 = arith.muli %c1_i32, %c16_i32_21 : i32
    %52 = tpu.assume_multiple %51, 16 : i32
    %53 = arith.index_cast %52 : i32 to index
    %c0_22 = arith.constant 0 : index
    %54 = vector.load %arg9[%53, %c0_22] : memref<128x384xf32, #tpu.memory_space<vmem>>, vector<16x384xf32>
    %55 = arith.truncf %47 : vector<16x128xf32> to vector<16x128xbf16>
    %cst_23 = arith.constant dense<0.000000e+00> : vector<16x384xf32>
    %56 = tpu.matmul %55, %10, %cst_23 {dimension_numbers = #tpu.dot_dimension_numbers<[1], [0], [0], [1], [0, 0, 1, 1], [], []>} : vector<16x128xbf16>, vector<128x384xbf16>, vector<16x384xf32> -> vector<16x384xf32>
    %57 = vector.extract_strided_slice %54 {offsets = [0, 0], sizes = [16, 128], strides = [1, 1]} : vector<16x384xf32> to vector<16x128xf32>
    %58 = vector.extract_strided_slice %56 {offsets = [0, 0], sizes = [16, 128], strides = [1, 1]} : vector<16x384xf32> to vector<16x128xf32>
    %59 = arith.addf %57, %58 : vector<16x128xf32>
    %60 = arith.negf %59 : vector<16x128xf32>
    %61 = math.exp %60 : vector<16x128xf32>
    %cst_24 = arith.constant 1.000000e+00 : f32
    %62 = vector.broadcast %cst_24 : f32 to vector<16x128xf32>
    %63 = arith.addf %62, %61 : vector<16x128xf32>
    %64 = arith.divf %62, %63 : vector<16x128xf32>
    %65 = vector.extract_strided_slice %54 {offsets = [0, 128], sizes = [16, 128], strides = [1, 1]} : vector<16x384xf32> to vector<16x128xf32>
    %66 = vector.extract_strided_slice %56 {offsets = [0, 128], sizes = [16, 128], strides = [1, 1]} : vector<16x384xf32> to vector<16x128xf32>
    %67 = arith.addf %65, %66 : vector<16x128xf32>
    %68 = arith.negf %67 : vector<16x128xf32>
    %69 = math.exp %68 : vector<16x128xf32>
    %cst_25 = arith.constant 1.000000e+00 : f32
    %70 = vector.broadcast %cst_25 : f32 to vector<16x128xf32>
    %71 = arith.addf %70, %69 : vector<16x128xf32>
    %72 = arith.divf %70, %71 : vector<16x128xf32>
    %73 = vector.extract_strided_slice %54 {offsets = [0, 256], sizes = [16, 128], strides = [1, 1]} : vector<16x384xf32> to vector<16x128xf32>
    %74 = vector.extract_strided_slice %56 {offsets = [0, 256], sizes = [16, 128], strides = [1, 1]} : vector<16x384xf32> to vector<16x128xf32>
    %75 = arith.addf %74, %13 : vector<16x128xf32>
    %76 = arith.mulf %64, %75 : vector<16x128xf32>
    %77 = arith.addf %73, %76 : vector<16x128xf32>
    %78 = math.tanh %77 : vector<16x128xf32>
    %cst_26 = arith.constant 1.000000e+00 : f32
    %79 = vector.broadcast %cst_26 : f32 to vector<16x128xf32>
    %80 = arith.subf %79, %72 : vector<16x128xf32>
    %81 = arith.mulf %80, %78 : vector<16x128xf32>
    %82 = arith.mulf %72, %47 : vector<16x128xf32>
    %83 = arith.addf %81, %82 : vector<16x128xf32>
    %84 = arith.truncf %83 : vector<16x128xf32> to vector<16x128xbf16>
    %85 = arith.index_cast %52 : i32 to index
    %c0_27 = arith.constant 0 : index
    %86 = vector.load %arg6[%85, %c0_27] : memref<128x128xbf16, #tpu.memory_space<vmem>>, vector<16x128xbf16>
    tpu.vector_store %arg6[%85, %c0_27], %84 {strides = array<i32>} : memref<128x128xbf16, #tpu.memory_space<vmem>>, vector<16x128xbf16>,
    %c2_i32 = arith.constant 2 : i32
    %c16_i32_28 = arith.constant 16 : i32
    %87 = arith.muli %c2_i32, %c16_i32_28 : i32
    %88 = tpu.assume_multiple %87, 16 : i32
    %89 = arith.index_cast %88 : i32 to index
    %c0_29 = arith.constant 0 : index
    %90 = vector.load %arg9[%89, %c0_29] : memref<128x384xf32, #tpu.memory_space<vmem>>, vector<16x384xf32>
    %91 = arith.truncf %83 : vector<16x128xf32> to vector<16x128xbf16>
    %cst_30 = arith.constant dense<0.000000e+00> : vector<16x384xf32>
    %92 = tpu.matmul %91, %10, %cst_30 {dimension_numbers = #tpu.dot_dimension_numbers<[1], [0], [0], [1], [0, 0, 1, 1], [], []>} : vector<16x128xbf16>, vector<128x384xbf16>, vector<16x384xf32> -> vector<16x384xf32>
    %93 = vector.extract_strided_slice %90 {offsets = [0, 0], sizes = [16, 128], strides = [1, 1]} : vector<16x384xf32> to vector<16x128xf32>
    %94 = vector.extract_strided_slice %92 {offsets = [0, 0], sizes = [16, 128], strides = [1, 1]} : vector<16x384xf32> to vector<16x128xf32>
    %95 = arith.addf %93, %94 : vector<16x128xf32>
    %96 = arith.negf %95 : vector<16x128xf32>
    %97 = math.exp %96 : vector<16x128xf32>
    %cst_31 = arith.constant 1.000000e+00 : f32
    %98 = vector.broadcast %cst_31 : f32 to vector<16x128xf32>
    %99 = arith.addf %98, %97 : vector<16x128xf32>
    %100 = arith.divf %98, %99 : vector<16x128xf32>
    %101 = vector.extract_strided_slice %90 {offsets = [0, 128], sizes = [16, 128], strides = [1, 1]} : vector<16x384xf32> to vector<16x128xf32>
    %102 = vector.extract_strided_slice %92 {offsets = [0, 128], sizes = [16, 128], strides = [1, 1]} : vector<16x384xf32> to vector<16x128xf32>
    %103 = arith.addf %101, %102 : vector<16x128xf32>
    %104 = arith.negf %103 : vector<16x128xf32>
    %105 = math.exp %104 : vector<16x128xf32>
    %cst_32 = arith.constant 1.000000e+00 : f32
    %106 = vector.broadcast %cst_32 : f32 to vector<16x128xf32>
    %107 = arith.addf %106, %105 : vector<16x128xf32>
    %108 = arith.divf %106, %107 : vector<16x128xf32>
    %109 = vector.extract_strided_slice %90 {offsets = [0, 256], sizes = [16, 128], strides = [1, 1]} : vector<16x384xf32> to vector<16x128xf32>
    %110 = vector.extract_strided_slice %92 {offsets = [0, 256], sizes = [16, 128], strides = [1, 1]} : vector<16x384xf32> to vector<16x128xf32>
    %111 = arith.addf %110, %13 : vector<16x128xf32>
    %112 = arith.mulf %100, %111 : vector<16x128xf32>
    %113 = arith.addf %109, %112 : vector<16x128xf32>
    %114 = math.tanh %113 : vector<16x128xf32>
    %cst_33 = arith.constant 1.000000e+00 : f32
    %115 = vector.broadcast %cst_33 : f32 to vector<16x128xf32>
    %116 = arith.subf %115, %108 : vector<16x128xf32>
    %117 = arith.mulf %116, %114 : vector<16x128xf32>
    %118 = arith.mulf %108, %83 : vector<16x128xf32>
    %119 = arith.addf %117, %118 : vector<16x128xf32>
    %120 = arith.truncf %119 : vector<16x128xf32> to vector<16x128xbf16>
    %121 = arith.index_cast %88 : i32 to index
    %c0_34 = arith.constant 0 : index
    %122 = vector.load %arg6[%121, %c0_34] : memref<128x128xbf16, #tpu.memory_space<vmem>>, vector<16x128xbf16>
    tpu.vector_store %arg6[%121, %c0_34], %120 {strides = array<i32>} : memref<128x128xbf16, #tpu.memory_space<vmem>>, vector<16x128xbf16>,
    %c3_i32 = arith.constant 3 : i32
    %c16_i32_35 = arith.constant 16 : i32
    %123 = arith.muli %c3_i32, %c16_i32_35 : i32
    %124 = tpu.assume_multiple %123, 16 : i32
    %125 = arith.index_cast %124 : i32 to index
    %c0_36 = arith.constant 0 : index
    %126 = vector.load %arg9[%125, %c0_36] : memref<128x384xf32, #tpu.memory_space<vmem>>, vector<16x384xf32>
    %127 = arith.truncf %119 : vector<16x128xf32> to vector<16x128xbf16>
    %cst_37 = arith.constant dense<0.000000e+00> : vector<16x384xf32>
    %128 = tpu.matmul %127, %10, %cst_37 {dimension_numbers = #tpu.dot_dimension_numbers<[1], [0], [0], [1], [0, 0, 1, 1], [], []>} : vector<16x128xbf16>, vector<128x384xbf16>, vector<16x384xf32> -> vector<16x384xf32>
    %129 = vector.extract_strided_slice %126 {offsets = [0, 0], sizes = [16, 128], strides = [1, 1]} : vector<16x384xf32> to vector<16x128xf32>
    %130 = vector.extract_strided_slice %128 {offsets = [0, 0], sizes = [16, 128], strides = [1, 1]} : vector<16x384xf32> to vector<16x128xf32>
    %131 = arith.addf %129, %130 : vector<16x128xf32>
    %132 = arith.negf %131 : vector<16x128xf32>
    %133 = math.exp %132 : vector<16x128xf32>
    %cst_38 = arith.constant 1.000000e+00 : f32
    %134 = vector.broadcast %cst_38 : f32 to vector<16x128xf32>
    %135 = arith.addf %134, %133 : vector<16x128xf32>
    %136 = arith.divf %134, %135 : vector<16x128xf32>
    %137 = vector.extract_strided_slice %126 {offsets = [0, 128], sizes = [16, 128], strides = [1, 1]} : vector<16x384xf32> to vector<16x128xf32>
    %138 = vector.extract_strided_slice %128 {offsets = [0, 128], sizes = [16, 128], strides = [1, 1]} : vector<16x384xf32> to vector<16x128xf32>
    %139 = arith.addf %137, %138 : vector<16x128xf32>
    %140 = arith.negf %139 : vector<16x128xf32>
    %141 = math.exp %140 : vector<16x128xf32>
    %cst_39 = arith.constant 1.000000e+00 : f32
    %142 = vector.broadcast %cst_39 : f32 to vector<16x128xf32>
    %143 = arith.addf %142, %141 : vector<16x128xf32>
    %144 = arith.divf %142, %143 : vector<16x128xf32>
    %145 = vector.extract_strided_slice %126 {offsets = [0, 256], sizes = [16, 128], strides = [1, 1]} : vector<16x384xf32> to vector<16x128xf32>
    %146 = vector.extract_strided_slice %128 {offsets = [0, 256], sizes = [16, 128], strides = [1, 1]} : vector<16x384xf32> to vector<16x128xf32>
    %147 = arith.addf %146, %13 : vector<16x128xf32>
    %148 = arith.mulf %136, %147 : vector<16x128xf32>
    %149 = arith.addf %145, %148 : vector<16x128xf32>
    %150 = math.tanh %149 : vector<16x128xf32>
    %cst_40 = arith.constant 1.000000e+00 : f32
    %151 = vector.broadcast %cst_40 : f32 to vector<16x128xf32>
    %152 = arith.subf %151, %144 : vector<16x128xf32>
    %153 = arith.mulf %152, %150 : vector<16x128xf32>
    %154 = arith.mulf %144, %119 : vector<16x128xf32>
    %155 = arith.addf %153, %154 : vector<16x128xf32>
    %156 = arith.truncf %155 : vector<16x128xf32> to vector<16x128xbf16>
    %157 = arith.index_cast %124 : i32 to index
    %c0_41 = arith.constant 0 : index
    %158 = vector.load %arg6[%157, %c0_41] : memref<128x128xbf16, #tpu.memory_space<vmem>>, vector<16x128xbf16>
    tpu.vector_store %arg6[%157, %c0_41], %156 {strides = array<i32>} : memref<128x128xbf16, #tpu.memory_space<vmem>>, vector<16x128xbf16>,
    %c4_i32 = arith.constant 4 : i32
    %c16_i32_42 = arith.constant 16 : i32
    %159 = arith.muli %c4_i32, %c16_i32_42 : i32
    %160 = tpu.assume_multiple %159, 16 : i32
    %161 = arith.index_cast %160 : i32 to index
    %c0_43 = arith.constant 0 : index
    %162 = vector.load %arg9[%161, %c0_43] : memref<128x384xf32, #tpu.memory_space<vmem>>, vector<16x384xf32>
    %163 = arith.truncf %155 : vector<16x128xf32> to vector<16x128xbf16>
    %cst_44 = arith.constant dense<0.000000e+00> : vector<16x384xf32>
    %164 = tpu.matmul %163, %10, %cst_44 {dimension_numbers = #tpu.dot_dimension_numbers<[1], [0], [0], [1], [0, 0, 1, 1], [], []>} : vector<16x128xbf16>, vector<128x384xbf16>, vector<16x384xf32> -> vector<16x384xf32>
    %165 = vector.extract_strided_slice %162 {offsets = [0, 0], sizes = [16, 128], strides = [1, 1]} : vector<16x384xf32> to vector<16x128xf32>
    %166 = vector.extract_strided_slice %164 {offsets = [0, 0], sizes = [16, 128], strides = [1, 1]} : vector<16x384xf32> to vector<16x128xf32>
    %167 = arith.addf %165, %166 : vector<16x128xf32>
    %168 = arith.negf %167 : vector<16x128xf32>
    %169 = math.exp %168 : vector<16x128xf32>
    %cst_45 = arith.constant 1.000000e+00 : f32
    %170 = vector.broadcast %cst_45 : f32 to vector<16x128xf32>
    %171 = arith.addf %170, %169 : vector<16x128xf32>
    %172 = arith.divf %170, %171 : vector<16x128xf32>
    %173 = vector.extract_strided_slice %162 {offsets = [0, 128], sizes = [16, 128], strides = [1, 1]} : vector<16x384xf32> to vector<16x128xf32>
    %174 = vector.extract_strided_slice %164 {offsets = [0, 128], sizes = [16, 128], strides = [1, 1]} : vector<16x384xf32> to vector<16x128xf32>
    %175 = arith.addf %173, %174 : vector<16x128xf32>
    %176 = arith.negf %175 : vector<16x128xf32>
    %177 = math.exp %176 : vector<16x128xf32>
    %cst_46 = arith.constant 1.000000e+00 : f32
    %178 = vector.broadcast %cst_46 : f32 to vector<16x128xf32>
    %179 = arith.addf %178, %177 : vector<16x128xf32>
    %180 = arith.divf %178, %179 : vector<16x128xf32>
    %181 = vector.extract_strided_slice %162 {offsets = [0, 256], sizes = [16, 128], strides = [1, 1]} : vector<16x384xf32> to vector<16x128xf32>
    %182 = vector.extract_strided_slice %164 {offsets = [0, 256], sizes = [16, 128], strides = [1, 1]} : vector<16x384xf32> to vector<16x128xf32>
    %183 = arith.addf %182, %13 : vector<16x128xf32>
    %184 = arith.mulf %172, %183 : vector<16x128xf32>
    %185 = arith.addf %181, %184 : vector<16x128xf32>
    %186 = math.tanh %185 : vector<16x128xf32>
    %cst_47 = arith.constant 1.000000e+00 : f32
    %187 = vector.broadcast %cst_47 : f32 to vector<16x128xf32>
    %188 = arith.subf %187, %180 : vector<16x128xf32>
    %189 = arith.mulf %188, %186 : vector<16x128xf32>
    %190 = arith.mulf %180, %155 : vector<16x128xf32>
    %191 = arith.addf %189, %190 : vector<16x128xf32>
    %192 = arith.truncf %191 : vector<16x128xf32> to vector<16x128xbf16>
    %193 = arith.index_cast %160 : i32 to index
    %c0_48 = arith.constant 0 : index
    %194 = vector.load %arg6[%193, %c0_48] : memref<128x128xbf16, #tpu.memory_space<vmem>>, vector<16x128xbf16>
    tpu.vector_store %arg6[%193, %c0_48], %192 {strides = array<i32>} : memref<128x128xbf16, #tpu.memory_space<vmem>>, vector<16x128xbf16>,
    %c5_i32 = arith.constant 5 : i32
    %c16_i32_49 = arith.constant 16 : i32
    %195 = arith.muli %c5_i32, %c16_i32_49 : i32
    %196 = tpu.assume_multiple %195, 16 : i32
    %197 = arith.index_cast %196 : i32 to index
    %c0_50 = arith.constant 0 : index
    %198 = vector.load %arg9[%197, %c0_50] : memref<128x384xf32, #tpu.memory_space<vmem>>, vector<16x384xf32>
    %199 = arith.truncf %191 : vector<16x128xf32> to vector<16x128xbf16>
    %cst_51 = arith.constant dense<0.000000e+00> : vector<16x384xf32>
    %200 = tpu.matmul %199, %10, %cst_51 {dimension_numbers = #tpu.dot_dimension_numbers<[1], [0], [0], [1], [0, 0, 1, 1], [], []>} : vector<16x128xbf16>, vector<128x384xbf16>, vector<16x384xf32> -> vector<16x384xf32>
    %201 = vector.extract_strided_slice %198 {offsets = [0, 0], sizes = [16, 128], strides = [1, 1]} : vector<16x384xf32> to vector<16x128xf32>
    %202 = vector.extract_strided_slice %200 {offsets = [0, 0], sizes = [16, 128], strides = [1, 1]} : vector<16x384xf32> to vector<16x128xf32>
    %203 = arith.addf %201, %202 : vector<16x128xf32>
    %204 = arith.negf %203 : vector<16x128xf32>
    %205 = math.exp %204 : vector<16x128xf32>
    %cst_52 = arith.constant 1.000000e+00 : f32
    %206 = vector.broadcast %cst_52 : f32 to vector<16x128xf32>
    %207 = arith.addf %206, %205 : vector<16x128xf32>
    %208 = arith.divf %206, %207 : vector<16x128xf32>
    %209 = vector.extract_strided_slice %198 {offsets = [0, 128], sizes = [16, 128], strides = [1, 1]} : vector<16x384xf32> to vector<16x128xf32>
    %210 = vector.extract_strided_slice %200 {offsets = [0, 128], sizes = [16, 128], strides = [1, 1]} : vector<16x384xf32> to vector<16x128xf32>
    %211 = arith.addf %209, %210 : vector<16x128xf32>
    %212 = arith.negf %211 : vector<16x128xf32>
    %213 = math.exp %212 : vector<16x128xf32>
    %cst_53 = arith.constant 1.000000e+00 : f32
    %214 = vector.broadcast %cst_53 : f32 to vector<16x128xf32>
    %215 = arith.addf %214, %213 : vector<16x128xf32>
    %216 = arith.divf %214, %215 : vector<16x128xf32>
    %217 = vector.extract_strided_slice %198 {offsets = [0, 256], sizes = [16, 128], strides = [1, 1]} : vector<16x384xf32> to vector<16x128xf32>
    %218 = vector.extract_strided_slice %200 {offsets = [0, 256], sizes = [16, 128], strides = [1, 1]} : vector<16x384xf32> to vector<16x128xf32>
    %219 = arith.addf %218, %13 : vector<16x128xf32>
    %220 = arith.mulf %208, %219 : vector<16x128xf32>
    %221 = arith.addf %217, %220 : vector<16x128xf32>
    %222 = math.tanh %221 : vector<16x128xf32>
    %cst_54 = arith.constant 1.000000e+00 : f32
    %223 = vector.broadcast %cst_54 : f32 to vector<16x128xf32>
    %224 = arith.subf %223, %216 : vector<16x128xf32>
    %225 = arith.mulf %224, %222 : vector<16x128xf32>
    %226 = arith.mulf %216, %191 : vector<16x128xf32>
    %227 = arith.addf %225, %226 : vector<16x128xf32>
    %228 = arith.truncf %227 : vector<16x128xf32> to vector<16x128xbf16>
    %229 = arith.index_cast %196 : i32 to index
    %c0_55 = arith.constant 0 : index
    %230 = vector.load %arg6[%229, %c0_55] : memref<128x128xbf16, #tpu.memory_space<vmem>>, vector<16x128xbf16>
    tpu.vector_store %arg6[%229, %c0_55], %228 {strides = array<i32>} : memref<128x128xbf16, #tpu.memory_space<vmem>>, vector<16x128xbf16>,
    %c6_i32 = arith.constant 6 : i32
    %c16_i32_56 = arith.constant 16 : i32
    %231 = arith.muli %c6_i32, %c16_i32_56 : i32
    %232 = tpu.assume_multiple %231, 16 : i32
    %233 = arith.index_cast %232 : i32 to index
    %c0_57 = arith.constant 0 : index
    %234 = vector.load %arg9[%233, %c0_57] : memref<128x384xf32, #tpu.memory_space<vmem>>, vector<16x384xf32>
    %235 = arith.truncf %227 : vector<16x128xf32> to vector<16x128xbf16>
    %cst_58 = arith.constant dense<0.000000e+00> : vector<16x384xf32>
    %236 = tpu.matmul %235, %10, %cst_58 {dimension_numbers = #tpu.dot_dimension_numbers<[1], [0], [0], [1], [0, 0, 1, 1], [], []>} : vector<16x128xbf16>, vector<128x384xbf16>, vector<16x384xf32> -> vector<16x384xf32>
    %237 = vector.extract_strided_slice %234 {offsets = [0, 0], sizes = [16, 128], strides = [1, 1]} : vector<16x384xf32> to vector<16x128xf32>
    %238 = vector.extract_strided_slice %236 {offsets = [0, 0], sizes = [16, 128], strides = [1, 1]} : vector<16x384xf32> to vector<16x128xf32>
    %239 = arith.addf %237, %238 : vector<16x128xf32>
    %240 = arith.negf %239 : vector<16x128xf32>
    %241 = math.exp %240 : vector<16x128xf32>
    %cst_59 = arith.constant 1.000000e+00 : f32
    %242 = vector.broadcast %cst_59 : f32 to vector<16x128xf32>
    %243 = arith.addf %242, %241 : vector<16x128xf32>
    %244 = arith.divf %242, %243 : vector<16x128xf32>
    %245 = vector.extract_strided_slice %234 {offsets = [0, 128], sizes = [16, 128], strides = [1, 1]} : vector<16x384xf32> to vector<16x128xf32>
    %246 = vector.extract_strided_slice %236 {offsets = [0, 128], sizes = [16, 128], strides = [1, 1]} : vector<16x384xf32> to vector<16x128xf32>
    %247 = arith.addf %245, %246 : vector<16x128xf32>
    %248 = arith.negf %247 : vector<16x128xf32>
    %249 = math.exp %248 : vector<16x128xf32>
    %cst_60 = arith.constant 1.000000e+00 : f32
    %250 = vector.broadcast %cst_60 : f32 to vector<16x128xf32>
    %251 = arith.addf %250, %249 : vector<16x128xf32>
    %252 = arith.divf %250, %251 : vector<16x128xf32>
    %253 = vector.extract_strided_slice %234 {offsets = [0, 256], sizes = [16, 128], strides = [1, 1]} : vector<16x384xf32> to vector<16x128xf32>
    %254 = vector.extract_strided_slice %236 {offsets = [0, 256], sizes = [16, 128], strides = [1, 1]} : vector<16x384xf32> to vector<16x128xf32>
    %255 = arith.addf %254, %13 : vector<16x128xf32>
    %256 = arith.mulf %244, %255 : vector<16x128xf32>
    %257 = arith.addf %253, %256 : vector<16x128xf32>
    %258 = math.tanh %257 : vector<16x128xf32>
    %cst_61 = arith.constant 1.000000e+00 : f32
    %259 = vector.broadcast %cst_61 : f32 to vector<16x128xf32>
    %260 = arith.subf %259, %252 : vector<16x128xf32>
    %261 = arith.mulf %260, %258 : vector<16x128xf32>
    %262 = arith.mulf %252, %227 : vector<16x128xf32>
    %263 = arith.addf %261, %262 : vector<16x128xf32>
    %264 = arith.truncf %263 : vector<16x128xf32> to vector<16x128xbf16>
    %265 = arith.index_cast %232 : i32 to index
    %c0_62 = arith.constant 0 : index
    %266 = vector.load %arg6[%265, %c0_62] : memref<128x128xbf16, #tpu.memory_space<vmem>>, vector<16x128xbf16>
    tpu.vector_store %arg6[%265, %c0_62], %264 {strides = array<i32>} : memref<128x128xbf16, #tpu.memory_space<vmem>>, vector<16x128xbf16>,
    %c7_i32 = arith.constant 7 : i32
    %c16_i32_63 = arith.constant 16 : i32
    %267 = arith.muli %c7_i32, %c16_i32_63 : i32
    %268 = tpu.assume_multiple %267, 16 : i32
    %269 = arith.index_cast %268 : i32 to index
    %c0_64 = arith.constant 0 : index
    %270 = vector.load %arg9[%269, %c0_64] : memref<128x384xf32, #tpu.memory_space<vmem>>, vector<16x384xf32>
    %271 = arith.truncf %263 : vector<16x128xf32> to vector<16x128xbf16>
    %cst_65 = arith.constant dense<0.000000e+00> : vector<16x384xf32>
    %272 = tpu.matmul %271, %10, %cst_65 {dimension_numbers = #tpu.dot_dimension_numbers<[1], [0], [0], [1], [0, 0, 1, 1], [], []>} : vector<16x128xbf16>, vector<128x384xbf16>, vector<16x384xf32> -> vector<16x384xf32>
    %273 = vector.extract_strided_slice %270 {offsets = [0, 0], sizes = [16, 128], strides = [1, 1]} : vector<16x384xf32> to vector<16x128xf32>
    %274 = vector.extract_strided_slice %272 {offsets = [0, 0], sizes = [16, 128], strides = [1, 1]} : vector<16x384xf32> to vector<16x128xf32>
    %275 = arith.addf %273, %274 : vector<16x128xf32>
    %276 = arith.negf %275 : vector<16x128xf32>
    %277 = math.exp %276 : vector<16x128xf32>
    %cst_66 = arith.constant 1.000000e+00 : f32
    %278 = vector.broadcast %cst_66 : f32 to vector<16x128xf32>
    %279 = arith.addf %278, %277 : vector<16x128xf32>
    %280 = arith.divf %278, %279 : vector<16x128xf32>
    %281 = vector.extract_strided_slice %270 {offsets = [0, 128], sizes = [16, 128], strides = [1, 1]} : vector<16x384xf32> to vector<16x128xf32>
    %282 = vector.extract_strided_slice %272 {offsets = [0, 128], sizes = [16, 128], strides = [1, 1]} : vector<16x384xf32> to vector<16x128xf32>
    %283 = arith.addf %281, %282 : vector<16x128xf32>
    %284 = arith.negf %283 : vector<16x128xf32>
    %285 = math.exp %284 : vector<16x128xf32>
    %cst_67 = arith.constant 1.000000e+00 : f32
    %286 = vector.broadcast %cst_67 : f32 to vector<16x128xf32>
    %287 = arith.addf %286, %285 : vector<16x128xf32>
    %288 = arith.divf %286, %287 : vector<16x128xf32>
    %289 = vector.extract_strided_slice %270 {offsets = [0, 256], sizes = [16, 128], strides = [1, 1]} : vector<16x384xf32> to vector<16x128xf32>
    %290 = vector.extract_strided_slice %272 {offsets = [0, 256], sizes = [16, 128], strides = [1, 1]} : vector<16x384xf32> to vector<16x128xf32>
    %291 = arith.addf %290, %13 : vector<16x128xf32>
    %292 = arith.mulf %280, %291 : vector<16x128xf32>
    %293 = arith.addf %289, %292 : vector<16x128xf32>
    %294 = math.tanh %293 : vector<16x128xf32>
    %cst_68 = arith.constant 1.000000e+00 : f32
    %295 = vector.broadcast %cst_68 : f32 to vector<16x128xf32>
    %296 = arith.subf %295, %288 : vector<16x128xf32>
    %297 = arith.mulf %296, %294 : vector<16x128xf32>
    %298 = arith.mulf %288, %263 : vector<16x128xf32>
    %299 = arith.addf %297, %298 : vector<16x128xf32>
    %300 = arith.truncf %299 : vector<16x128xf32> to vector<16x128xbf16>
    %301 = arith.index_cast %268 : i32 to index
    %c0_69 = arith.constant 0 : index
    %302 = vector.load %arg6[%301, %c0_69] : memref<128x128xbf16, #tpu.memory_space<vmem>>, vector<16x128xbf16>
    tpu.vector_store %arg6[%301, %c0_69], %300 {strides = array<i32>} : memref<128x128xbf16, #tpu.memory_space<vmem>>, vector<16x128xbf16>,
    %c8_i32 = arith.constant 8 : i32
    %c0_70 = arith.constant 0 : index
    %c0_71 = arith.constant 0 : index
    %303 = vector.load %arg8[%c0_70, %c0_71] : memref<16x128xf32, #tpu.memory_space<vmem>>, vector<16x128xf32>
    tpu.vector_store %arg8[%c0_70, %c0_71], %299 {strides = array<i32>} : memref<16x128xf32, #tpu.memory_space<vmem>>, vector<16x128xf32>,
    %c0_i32_72 = arith.constant 0 : i32
    %304 = arith.cmpi eq, %arg0, %c0_i32_72 : i32
    %305 = arith.extui %304 : i1 to i32
    %c0_i32_73 = arith.constant 0 : i32
    %306 = arith.cmpi ne, %305, %c0_i32_73 : i32
    scf.if %306 {
      %c0_74 = arith.constant 0 : index
      %c0_75 = arith.constant 0 : index
      %307 = vector.load %arg7[%c0_74, %c0_75] : memref<16x128xf32, #tpu.memory_space<vmem>>, vector<16x128xf32>
      tpu.vector_store %arg7[%c0_74, %c0_75], %299 {strides = array<i32>} : memref<16x128xf32, #tpu.memory_space<vmem>>, vector<16x128xf32>,
    } else {
    }
    return
  }
  func.func @transform_0(%arg0: i32) -> (i32, i32) {
    %c0_i32 = arith.constant 0 : i32
    %c0_i32_0 = arith.constant 0 : i32
    return %arg0, %c0_i32 : i32, i32
  }
  func.func @transform_1(%arg0: i32) -> (i32, i32) {
    %c0_i32 = arith.constant 0 : i32
    %c0_i32_0 = arith.constant 0 : i32
    %c0_i32_1 = arith.constant 0 : i32
    return %c0_i32, %c0_i32_0 : i32, i32
  }
  func.func @transform_2(%arg0: i32) -> (i32, i32) {
    %c0_i32 = arith.constant 0 : i32
    %c0_i32_0 = arith.constant 0 : i32
    %c0_i32_1 = arith.constant 0 : i32
    return %c0_i32, %c0_i32_0 : i32, i32
  }
  func.func @transform_3(%arg0: i32) -> (i32, i32) {
    %c0_i32 = arith.constant 0 : i32
    %c0_i32_0 = arith.constant 0 : i32
    %c0_i32_1 = arith.constant 0 : i32
    return %c0_i32, %c0_i32_0 : i32, i32
  }
  func.func @transform_4(%arg0: i32) -> (i32, i32) {
    %c0_i32 = arith.constant 0 : i32
    %c0_i32_0 = arith.constant 0 : i32
    %c0_i32_1 = arith.constant 0 : i32
    return %c0_i32, %c0_i32_0 : i32, i32
  }
  func.func @transform_5(%arg0: i32) -> (i32, i32) {
    %c0_i32 = arith.constant 0 : i32
    %c0_i32_0 = arith.constant 0 : i32
    return %arg0, %c0_i32 : i32, i32
  }
  func.func @transform_6(%arg0: i32) -> (i32, i32) {
    %c0_i32 = arith.constant 0 : i32
    %c0_i32_0 = arith.constant 0 : i32
    %c0_i32_1 = arith.constant 0 : i32
    return %c0_i32, %c0_i32_0 : i32, i32
  }
}

</mosaic_0001>

<llo_original>
// kernel: tpu_custom_call.1
$region0: #{tpu_custom_call.1}
  #allocation0 [shape = 'u32[]', space=smem, size = 0x4, offset = 0x4, fixed_abs, tag = 'smem constant byte address 0x4 - core index']
  #allocation1 [shape = 'u32[72,128]{1,0:T(1,128)}', space=vmem, size = 0x9000, scoped, tag = 'internal scratch']
  #allocation2 [shape = 'f32[16,128]{1,0:T(8,128)}', space=vmem, size = 0x2000, scoped, tag = 'scratch operand']
  #allocation3 [shape = 'f32[128,384]{1,0:T(8,128)}', space=vmem, size = 0x30000, scoped, tag = 'scratch operand']
  %s0 = inlined_call_operand.vmem [shape: bf16[128,32], index: 0, kind: input, shape index: {}]
  %s1 = inlined_call_operand.vmem [shape: bf16[32,384], index: 1, kind: input, shape index: {}]
  %s2 = inlined_call_operand.hbm [shape: bf16[128,384], index: 2, kind: input, shape index: {}]
  %s3 = inlined_call_operand.vmem [shape: f32[1,384], index: 3, kind: input, shape index: {}]
  %s4 = inlined_call_operand.vmem [shape: f32[1,128], index: 4, kind: input, shape index: {}]
  %s5 = inlined_call_operand.hbm [shape: bf16[128,128], index: 5, kind: output, shape index: {0}]
  %s6 = inlined_call_operand.hbm [shape: f32[16,128], index: 6, kind: output, shape index: {1}]
  %7 = xla_tuple %s5, %s6
  %s8 = sld [smem:[#allocation0]]
  $region50: #{tpu_custom_call.1} parent=0
    _
  %s10 = ssub.s32 1, %s8
  %s11 = scalar_select 0, %s10, %s8
  $region1: #{tpu_custom_call.1} parent=0
    #allocation4 [shape = 'u8[98304]{0}', space=vmem, size = 0x18000, scoped, tag = 'input window, operand 2, single buffered']
    #allocation5 [shape = 's32[1]{0}', space=sflag, size = 0x4, scoped, tag = 'scoped memory for tpu_custom_call.1']
    #allocation6 [shape = 's32[1]{0}', space=sflag, size = 0x4, scoped, tag = 'scoped memory for tpu_custom_call.1']
    #allocation7 [shape = 'u8[32768]{0}', space=vmem, size = 0x8000, scoped, tag = 'output window, operand 0, single buffered']
    #allocation8 [shape = 'u8[8192]{0}', space=vmem, size = 0x2000, scoped, tag = 'output window, operand 1, single buffered']
    #allocation9 [shape = 's32[1]{0}', space=sflag, size = 0x4, scoped, tag = 'scoped memory for tpu_custom_call.1']
    %12 = vsyncpa [#allocation5], 0
    %13 = vsyncpa [#allocation6], 0
    %14 = vsyncpa [#allocation9], 0
    // Predicated region
    $region2: #{tpu_custom_call.1} parent=1 // pred_check
      _
    $region3: #{tpu_custom_call.1} parent=1 // pred_check_branch
      %16 = sbr.rel (0) target = $region5
    $region4: #{tpu_custom_call.1} parent=1 // pred_region
      _
    $region5: #{tpu_custom_call.1} parent=1 // pred_fallthru
      _
    // Predicated region
    $region6: #{tpu_custom_call.1} parent=1 // pred_check
      _
    $region7: #{tpu_custom_call.1} parent=1 // pred_check_branch
      %18 = sbr.rel (0) target = $region9
    $region8: #{tpu_custom_call.1} parent=1 // pred_region
      _
    $region9: #{tpu_custom_call.1} parent=1 // pred_fallthru
      _
    // Predicated region
    $region10: #{tpu_custom_call.1} parent=1 // pred_check
      _
    $region11: #{tpu_custom_call.1} parent=1 // pred_check_branch
      %20 = sbr.rel (0) target = $region13
    $region12: #{tpu_custom_call.1} parent=1 // pred_region
      %22 = vsyncadd [#allocation5], 0
      %s23 = sshll.u32 %s2, 4
      %s24 = int_to_ptr.hbm [resolvable:$true] %s23
      %s25 = sshll.u32 [#allocation4], 4
      %s26 = int_to_ptr.vmem [resolvable:$true] %s25
      %31 = dma.hbm_to_vmem [thread:$0]  %s24, 3072, %s26, [#allocation5], 192, 192, 12
    $region13: #{tpu_custom_call.1} parent=1 // pred_fallthru
      _
    // Predicated region
    $region14: #{tpu_custom_call.1} parent=1 // pred_check
      _
    $region15: #{tpu_custom_call.1} parent=1 // pred_check_branch
      %33 = sbr.rel (0) target = $region17
    $region16: #{tpu_custom_call.1} parent=1 // pred_region
      _
    $region17: #{tpu_custom_call.1} parent=1 // pred_fallthru
      _
    // Predicated region
    $region18: #{tpu_custom_call.1} parent=1 // pred_check
      _
    $region19: #{tpu_custom_call.1} parent=1 // pred_check_branch
      %35 = sbr.rel (0) target = $region21
    $region20: #{tpu_custom_call.1} parent=1 // pred_region
      _
    $region21: #{tpu_custom_call.1} parent=1 // pred_fallthru
      _
    // Predicated region
    $region22: #{tpu_custom_call.1} parent=1 // pred_check
      _
    $region23: #{tpu_custom_call.1} parent=1 // pred_check_branch
      %37 = sbr.rel (0) target = $region25
    $region24: #{tpu_custom_call.1} parent=1 // pred_region
      %39 = dma.done [#allocation5], 3072
    $region25: #{tpu_custom_call.1} parent=1 // pred_fallthru
      _
    %p41 = scmp.eq.s32.totalorder 0, 0
    // Predicated region
    $region26: #{tpu_custom_call.1} parent=1 // pred_check
      %p42 = pneg %p41
    $region27: #{tpu_custom_call.1} parent=1 // pred_check_branch
      %44 = sbr.rel (%p42) target = $region29
    $region28: #{tpu_custom_call.1} parent=1 // pred_region
      %45 = vst [vmem:[#allocation2] sm:$0xff] 0.0
      %46 = vst [vmem:[#allocation2 + $0x8] sm:$0xff] 0.0
    $region29: #{tpu_custom_call.1} parent=1 // pred_fallthru
      _
    %v47 = vld [vmem:[%s0] sm:$0xf]
    %v48 = vld [vmem:[%s0 + $0x4] sm:$0xf]
    %v49 = vld [vmem:[%s0 + $0x8] sm:$0xf]
    %v50 = vld [vmem:[%s0 + $0xc] sm:$0xf]
    %v51 = vld [vmem:[%s0 + $0x10] sm:$0xf]
    %v52 = vld [vmem:[%s0 + $0x14] sm:$0xf]
    %v53 = vld [vmem:[%s0 + $0x18] sm:$0xf]
    %v54 = vld [vmem:[%s0 + $0x1c] sm:$0xf]
    %v55 = vld [vmem:[%s0 + $0x20] sm:$0xf]
    %v56 = vld [vmem:[%s0 + $0x24] sm:$0xf]
    %v57 = vld [vmem:[%s0 + $0x28] sm:$0xf]
    %v58 = vld [vmem:[%s0 + $0x2c] sm:$0xf]
    %v59 = vld [vmem:[%s0 + $0x30] sm:$0xf]
    %v60 = vld [vmem:[%s0 + $0x34] sm:$0xf]
    %v61 = vld [vmem:[%s0 + $0x38] sm:$0xf]
    %v62 = vld [vmem:[%s0 + $0x3c] sm:$0xf]
    %v63 = vld [vmem:[%s1] sm:$0xff]
    %v64 = vld [vmem:[%s1 + $0x8] sm:$0xf]
    %v65 = vld [vmem:[%s1 + $0xc] sm:$0xff]
    %v66 = vld [vmem:[%s1 + $0x14] sm:$0xf]
    %v67 = vld [vmem:[%s1 + $0x18] sm:$0xff]
    %v68 = vld [vmem:[%s1 + $0x20] sm:$0xf]
    %v69 = vld [vmem:[%s1 + $0x24] sm:$0xff]
    %v70 = vld [vmem:[%s1 + $0x2c] sm:$0xf]
    %v71 = vld [vmem:[%s3] sm:$0x7]
    %v73 = vperm.slane %v71, 0
    %v74 = vperm.slane %v71, 1
    %v75 = vperm.slane %v71, 2
    %v95 = vunpack.c.l.b16 %v47
    %v96 = vunpack.c.l.b16 %v48
    %v97 = vunpack.c.l.b16 %v49
    %v98 = vunpack.c.l.b16 %v50
    %v99 = vunpack.c.l.b16 %v51
    %v100 = vunpack.c.l.b16 %v52
    %v101 = vunpack.c.l.b16 %v53
    %v102 = vunpack.c.l.b16 %v54
    %v103 = vunpack.c.l.b16 %v55
    %v104 = vunpack.c.l.b16 %v56
    %v105 = vunpack.c.l.b16 %v57
    %v106 = vunpack.c.l.b16 %v58
    %v107 = vunpack.c.l.b16 %v59
    %v108 = vunpack.c.l.b16 %v60
    %v109 = vunpack.c.l.b16 %v61
    %v110 = vunpack.c.l.b16 %v62
    %v111 = vpack.c.b16 %v96, %v95
    %v112 = vpack.c.b16 %v98, %v97
    %v113 = vpack.c.b16 %v100, %v99
    %v114 = vpack.c.b16 %v102, %v101
    %v115 = vpack.c.b16 %v104, %v103
    %v116 = vpack.c.b16 %v106, %v105
    %v117 = vpack.c.b16 %v108, %v107
    %v118 = vpack.c.b16 %v110, %v109
    %v127 = vunpack.c.l.b16 %v63
    %v128 = vunpack.c.h.b16 %v63
    %v129 = vunpack.c.l.b16 %v64
    %v130 = vunpack.c.l.b16 %v65
    %v131 = vunpack.c.h.b16 %v65
    %v132 = vunpack.c.l.b16 %v66
    %v133 = vunpack.c.l.b16 %v67
    %v134 = vunpack.c.h.b16 %v67
    %v135 = vunpack.c.l.b16 %v68
    %v136 = vunpack.c.l.b16 %v69
    %v137 = vunpack.c.h.b16 %v69
    %v138 = vunpack.c.l.b16 %v70
    %v139 = vpack.c.b16 %v130, %v127
    %v140 = vpack.c.b16 %v131, %v128
    %v141 = vpack.c.b16 %v132, %v129
    %v142 = vpack.c.b16 %v136, %v133
    %v143 = vpack.c.b16 %v137, %v134
    %v144 = vpack.c.b16 %v138, %v135
    %vm151 = vcmask 261120
    %v153 = vsel %vm151, %v111, 0
    %v156 = vsel %vm151, %v112, 0
    %v159 = vsel %vm151, %v113, 0
    %v162 = vsel %vm151, %v114, 0
    %v165 = vsel %vm151, %v115, 0
    %v168 = vsel %vm151, %v116, 0
    %v171 = vsel %vm151, %v117, 0
    %v174 = vsel %vm151, %v118, 0
    %176 = vmatpush.bf16.msra.mxu0 0
    %177 = vmatpush.bf16.msra.mxu0 0
    %178 = vmatpush.bf16.msra.mxu0 0
    %179 = vmatpush.bf16.msra.mxu0 0
    %180 = vmatpush.bf16.msra.mxu0 0
    %181 = vmatpush.bf16.msra.mxu0 0
    %182 = vmatpush.bf16.msra.mxu0 %v142
    %183 = vmatpush.bf16.msra.mxu0 %v139
    %184 = vmatmul.bf16.gmra.mxu0 %v153
    %v185 = vpop.f32.mrf.mxu0
    %v186 = vadd.f32 %v73, %v185
    %v187 = vpop.f32.mrf.mxu0
    %v188 = vadd.f32 %v73, %v187
    %189 = vmatmul.bf16.gmra.mxu0 %v156
    %v190 = vpop.f32.mrf.mxu0
    %v191 = vadd.f32 %v73, %v190
    %v192 = vpop.f32.mrf.mxu0
    %v193 = vadd.f32 %v73, %v192
    %194 = vmatmul.bf16.gmra.mxu0 %v159
    %v195 = vpop.f32.mrf.mxu0
    %v196 = vadd.f32 %v73, %v195
    %v197 = vpop.f32.mrf.mxu0
    %v198 = vadd.f32 %v73, %v197
    %199 = vmatmul.bf16.gmra.mxu0 %v162
    %v200 = vpop.f32.mrf.mxu0
    %v201 = vadd.f32 %v73, %v200
    %v202 = vpop.f32.mrf.mxu0
    %v203 = vadd.f32 %v73, %v202
    %204 = vmatmul.bf16.gmra.mxu0 %v165
    %v205 = vpop.f32.mrf.mxu0
    %v206 = vadd.f32 %v73, %v205
    %v207 = vpop.f32.mrf.mxu0
    %v208 = vadd.f32 %v73, %v207
    %209 = vmatmul.bf16.gmra.mxu0 %v168
    %v210 = vpop.f32.mrf.mxu0
    %v211 = vadd.f32 %v73, %v210
    %v212 = vpop.f32.mrf.mxu0
    %v213 = vadd.f32 %v73, %v212
    %214 = vmatmul.bf16.gmra.mxu0 %v171
    %v215 = vpop.f32.mrf.mxu0
    %v216 = vadd.f32 %v73, %v215
    %v217 = vpop.f32.mrf.mxu0
    %v218 = vadd.f32 %v73, %v217
    %219 = vmatmul.bf16.gmra.mxu0 %v174
    %v220 = vpop.f32.mrf.mxu0
    %v221 = vadd.f32 %v73, %v220
    %v222 = vpop.f32.mrf.mxu0
    %v223 = vadd.f32 %v73, %v222
    %224 = vdwg.mxu0
    %225 = vmatpush.bf16.msra.mxu0 0
    %226 = vmatpush.bf16.msra.mxu0 0
    %227 = vmatpush.bf16.msra.mxu0 0
    %228 = vmatpush.bf16.msra.mxu0 0
    %229 = vmatpush.bf16.msra.mxu0 0
    %230 = vmatpush.bf16.msra.mxu0 0
    %231 = vmatpush.bf16.msra.mxu0 %v143
    %232 = vmatpush.bf16.msra.mxu0 %v140
    %233 = vmatmul.bf16.gmra.mxu0 %v153
    %v234 = vpop.f32.mrf.mxu0
    %v235 = vadd.f32 %v74, %v234
    %v236 = vpop.f32.mrf.mxu0
    %v237 = vadd.f32 %v74, %v236
    %238 = vmatmul.bf16.gmra.mxu0 %v156
    %v239 = vpop.f32.mrf.mxu0
    %v240 = vadd.f32 %v74, %v239
    %v241 = vpop.f32.mrf.mxu0
    %v242 = vadd.f32 %v74, %v241
    %243 = vmatmul.bf16.gmra.mxu0 %v159
    %v244 = vpop.f32.mrf.mxu0
    %v245 = vadd.f32 %v74, %v244
    %v246 = vpop.f32.mrf.mxu0
    %v247 = vadd.f32 %v74, %v246
    %248 = vmatmul.bf16.gmra.mxu0 %v162
    %v249 = vpop.f32.mrf.mxu0
    %v250 = vadd.f32 %v74, %v249
    %v251 = vpop.f32.mrf.mxu0
    %v252 = vadd.f32 %v74, %v251
    %253 = vmatmul.bf16.gmra.mxu0 %v165
    %v254 = vpop.f32.mrf.mxu0
    %v255 = vadd.f32 %v74, %v254
    %v256 = vpop.f32.mrf.mxu0
    %v257 = vadd.f32 %v74, %v256
    %258 = vmatmul.bf16.gmra.mxu0 %v168
    %v259 = vpop.f32.mrf.mxu0
    %v260 = vadd.f32 %v74, %v259
    %v261 = vpop.f32.mrf.mxu0
    %v262 = vadd.f32 %v74, %v261
    %263 = vmatmul.bf16.gmra.mxu0 %v171
    %v264 = vpop.f32.mrf.mxu0
    %v265 = vadd.f32 %v74, %v264
    %v266 = vpop.f32.mrf.mxu0
    %v267 = vadd.f32 %v74, %v266
    %268 = vmatmul.bf16.gmra.mxu0 %v174
    %v269 = vpop.f32.mrf.mxu0
    %v270 = vadd.f32 %v74, %v269
    %v271 = vpop.f32.mrf.mxu0
    %v272 = vadd.f32 %v74, %v271
    %273 = vdwg.mxu0
    %274 = vmatpush.bf16.msra.mxu0 0
    %275 = vmatpush.bf16.msra.mxu0 0
    %276 = vmatpush.bf16.msra.mxu0 0
    %277 = vmatpush.bf16.msra.mxu0 0
    %278 = vmatpush.bf16.msra.mxu0 0
    %279 = vmatpush.bf16.msra.mxu0 0
    %280 = vmatpush.bf16.msra.mxu0 %v144
    %281 = vmatpush.bf16.msra.mxu0 %v141
    %282 = vmatmul.bf16.gmra.mxu0 %v153
    %v283 = vpop.f32.mrf.mxu0
    %v284 = vadd.f32 %v75, %v283
    %v285 = vpop.f32.mrf.mxu0
    %v286 = vadd.f32 %v75, %v285
    %287 = vmatmul.bf16.gmra.mxu0 %v156
    %v288 = vpop.f32.mrf.mxu0
    %v289 = vadd.f32 %v75, %v288
    %v290 = vpop.f32.mrf.mxu0
    %v291 = vadd.f32 %v75, %v290
    %292 = vmatmul.bf16.gmra.mxu0 %v159
    %v293 = vpop.f32.mrf.mxu0
    %v294 = vadd.f32 %v75, %v293
    %v295 = vpop.f32.mrf.mxu0
    %v296 = vadd.f32 %v75, %v295
    %297 = vmatmul.bf16.gmra.mxu0 %v162
    %v298 = vpop.f32.mrf.mxu0
    %v299 = vadd.f32 %v75, %v298
    %v300 = vpop.f32.mrf.mxu0
    %v301 = vadd.f32 %v75, %v300
    %302 = vmatmul.bf16.gmra.mxu0 %v165
    %v303 = vpop.f32.mrf.mxu0
    %v304 = vadd.f32 %v75, %v303
    %v305 = vpop.f32.mrf.mxu0
    %v306 = vadd.f32 %v75, %v305
    %307 = vmatmul.bf16.gmra.mxu0 %v168
    %v308 = vpop.f32.mrf.mxu0
    %v309 = vadd.f32 %v75, %v308
    %v310 = vpop.f32.mrf.mxu0
    %v311 = vadd.f32 %v75, %v310
    %312 = vmatmul.bf16.gmra.mxu0 %v171
    %v313 = vpop.f32.mrf.mxu0
    %v314 = vadd.f32 %v75, %v313
    %v315 = vpop.f32.mrf.mxu0
    %v316 = vadd.f32 %v75, %v315
    %317 = vmatmul.bf16.gmra.mxu0 %v174
    %v318 = vpop.f32.mrf.mxu0
    %v319 = vadd.f32 %v75, %v318
    %v320 = vpop.f32.mrf.mxu0
    %v321 = vadd.f32 %v75, %v320
    %322 = vdwg.mxu0
    %323 = vst [vmem:[#allocation3] sm:$0xff] %v186
    %324 = vst [vmem:[#allocation3 + $0x8] sm:$0xff] %v235
    %325 = vst [vmem:[#allocation3 + $0x10] sm:$0xff] %v284
    %326 = vst [vmem:[#allocation3 + $0x18] sm:$0xff] %v188
    %327 = vst [vmem:[#allocation3 + $0x20] sm:$0xff] %v237
    %328 = vst [vmem:[#allocation3 + $0x28] sm:$0xff] %v286
    %329 = vst [vmem:[#allocation3 + $0x30] sm:$0xff] %v191
    %330 = vst [vmem:[#allocation3 + $0x38] sm:$0xff] %v240
    %331 = vst [vmem:[#allocation3 + $0x40] sm:$0xff] %v289
    %332 = vst [vmem:[#allocation3 + $0x48] sm:$0xff] %v193
    %333 = vst [vmem:[#allocation3 + $0x50] sm:$0xff] %v242
    %334 = vst [vmem:[#allocation3 + $0x58] sm:$0xff] %v291
    %335 = vst [vmem:[#allocation3 + $0x60] sm:$0xff] %v196
    %336 = vst [vmem:[#allocation3 + $0x68] sm:$0xff] %v245
    %337 = vst [vmem:[#allocation3 + $0x70] sm:$0xff] %v294
    %338 = vst [vmem:[#allocation3 + $0x78] sm:$0xff] %v198
    %339 = vst [vmem:[#allocation3 + $0x80] sm:$0xff] %v247
    %340 = vst [vmem:[#allocation3 + $0x88] sm:$0xff] %v296
    %341 = vst [vmem:[#allocation3 + $0x90] sm:$0xff] %v201
    %342 = vst [vmem:[#allocation3 + $0x98] sm:$0xff] %v250
    %343 = vst [vmem:[#allocation3 + $0xa0] sm:$0xff] %v299
    %344 = vst [vmem:[#allocation3 + $0xa8] sm:$0xff] %v203
    %345 = vst [vmem:[#allocation3 + $0xb0] sm:$0xff] %v252
    %346 = vst [vmem:[#allocation3 + $0xb8] sm:$0xff] %v301
    %347 = vst [vmem:[#allocation3 + $0xc0] sm:$0xff] %v206
    %348 = vst [vmem:[#allocation3 + $0xc8] sm:$0xff] %v255
    %349 = vst [vmem:[#allocation3 + $0xd0] sm:$0xff] %v304
    %350 = vst [vmem:[#allocation3 + $0xd8] sm:$0xff] %v208
    %351 = vst [vmem:[#allocation3 + $0xe0] sm:$0xff] %v257
    %352 = vst [vmem:[#allocation3 + $0xe8] sm:$0xff] %v306
    %353 = vst [vmem:[#allocation3 + $0xf0] sm:$0xff] %v211
    %354 = vst [vmem:[#allocation3 + $0xf8] sm:$0xff] %v260
    %355 = vst [vmem:[#allocation3 + $0x100] sm:$0xff] %v309
    %356 = vst [vmem:[#allocation3 + $0x108] sm:$0xff] %v213
    %357 = vst [vmem:[#allocation3 + $0x110] sm:$0xff] %v262
    %358 = vst [vmem:[#allocation3 + $0x118] sm:$0xff] %v311
    %359 = vst [vmem:[#allocation3 + $0x120] sm:$0xff] %v216
    %360 = vst [vmem:[#allocation3 + $0x128] sm:$0xff] %v265
    %361 = vst [vmem:[#allocation3 + $0x130] sm:$0xff] %v314
    %362 = vst [vmem:[#allocation3 + $0x138] sm:$0xff] %v218
    %363 = vst [vmem:[#allocation3 + $0x140] sm:$0xff] %v267
    %364 = vst [vmem:[#allocation3 + $0x148] sm:$0xff] %v316
    %365 = vst [vmem:[#allocation3 + $0x150] sm:$0xff] %v221
    %366 = vst [vmem:[#allocation3 + $0x158] sm:$0xff] %v270
    %367 = vst [vmem:[#allocation3 + $0x160] sm:$0xff] %v319
    %368 = vst [vmem:[#allocation3 + $0x168] sm:$0xff] %v223
    %369 = vst [vmem:[#allocation3 + $0x170] sm:$0xff] %v272
    %370 = vst [vmem:[#allocation3 + $0x178] sm:$0xff] %v321
    %v371 = vld [vmem:[#allocation4] sm:$0xff]
    %v372 = vld [vmem:[#allocation4 + $0x8] sm:$0xf]
    %v373 = vld [vmem:[#allocation4 + $0xc] sm:$0xff]
    %v374 = vld [vmem:[#allocation4 + $0x14] sm:$0xf]
    %v375 = vld [vmem:[#allocation4 + $0x18] sm:$0xff]
    %v376 = vld [vmem:[#allocation4 + $0x20] sm:$0xf]
    %v377 = vld [vmem:[#allocation4 + $0x24] sm:$0xff]
    %v378 = vld [vmem:[#allocation4 + $0x2c] sm:$0xf]
    %v379 = vld [vmem:[#allocation4 + $0x30] sm:$0xff]
    %v380 = vld [vmem:[#allocation4 + $0x38] sm:$0xf]
    %v381 = vld [vmem:[#allocation4 + $0x3c] sm:$0xff]
    %v382 = vld [vmem:[#allocation4 + $0x44] sm:$0xf]
    %v383 = vld [vmem:[#allocation4 + $0x48] sm:$0xff]
    %v384 = vld [vmem:[#allocation4 + $0x50] sm:$0xf]
    %v385 = vld [vmem:[#allocation4 + $0x54] sm:$0xff]
    %v386 = vld [vmem:[#allocation4 + $0x5c] sm:$0xf]
    %v387 = vld [vmem:[#allocation4 + $0x60] sm:$0xff]
    %v388 = vld [vmem:[#allocation4 + $0x68] sm:$0xf]
    %v389 = vld [vmem:[#allocation4 + $0x6c] sm:$0xff]
    %v390 = vld [vmem:[#allocation4 + $0x74] sm:$0xf]
    %v391 = vld [vmem:[#allocation4 + $0x78] sm:$0xff]
    %v392 = vld [vmem:[#allocation4 + $0x80] sm:$0xf]
    %v393 = vld [vmem:[#allocation4 + $0x84] sm:$0xff]
    %v394 = vld [vmem:[#allocation4 + $0x8c] sm:$0xf]
    %v395 = vld [vmem:[#allocation4 + $0x90] sm:$0xff]
    %v396 = vld [vmem:[#allocation4 + $0x98] sm:$0xf]
    %v397 = vld [vmem:[#allocation4 + $0x9c] sm:$0xff]
    %v398 = vld [vmem:[#allocation4 + $0xa4] sm:$0xf]
    %v399 = vld [vmem:[#allocation4 + $0xa8] sm:$0xff]
    %v400 = vld [vmem:[#allocation4 + $0xb0] sm:$0xf]
    %v401 = vld [vmem:[#allocation4 + $0xb4] sm:$0xff]
    %v402 = vld [vmem:[#allocation4 + $0xbc] sm:$0xf]
    %v403 = vld [vmem:[%s4] sm:$0x1]
    %v405 = vperm.slane %v403, 0
    %v407 = vld [vmem:[#allocation2] sm:$0xff]
    %v408 = vld [vmem:[#allocation2 + $0x8] sm:$0xff]
    %s409 = smul.u32 0, 3
    %s410 = smul.addr %s409, 8
    %s411 = scalar_lea.vmem [#allocation3], %s410
    %v412 = vld [vmem:[%s411] sm:$0xff]
    %v413 = vld [vmem:[%s411 + $0x8] sm:$0xff]
    %v414 = vld [vmem:[%s411 + $0x10] sm:$0xff]
    %v415 = vld [vmem:[%s411 + $0x18] sm:$0xff]
    %v416 = vld [vmem:[%s411 + $0x20] sm:$0xff]
    %v417 = vld [vmem:[%s411 + $0x28] sm:$0xff]
    %v418 = vpack.c.bf16 %v408, %v407
    %v451 = vunpack.c.l.b16 %v371
    %v452 = vunpack.c.h.b16 %v371
    %v453 = vunpack.c.l.b16 %v372
    %v454 = vunpack.c.l.b16 %v373
    %v455 = vunpack.c.h.b16 %v373
    %v456 = vunpack.c.l.b16 %v374
    %v457 = vunpack.c.l.b16 %v375
    %v458 = vunpack.c.h.b16 %v375
    %v459 = vunpack.c.l.b16 %v376
    %v460 = vunpack.c.l.b16 %v377
    %v461 = vunpack.c.h.b16 %v377
    %v462 = vunpack.c.l.b16 %v378
    %v463 = vunpack.c.l.b16 %v379
    %v464 = vunpack.c.h.b16 %v379
    %v465 = vunpack.c.l.b16 %v380
    %v466 = vunpack.c.l.b16 %v381
    %v467 = vunpack.c.h.b16 %v381
    %v468 = vunpack.c.l.b16 %v382
    %v469 = vunpack.c.l.b16 %v383
    %v470 = vunpack.c.h.b16 %v383
    %v471 = vunpack.c.l.b16 %v384
    %v472 = vunpack.c.l.b16 %v385
    %v473 = vunpack.c.h.b16 %v385
    %v474 = vunpack.c.l.b16 %v386
    %v475 = vunpack.c.l.b16 %v387
    %v476 = vunpack.c.h.b16 %v387
    %v477 = vunpack.c.l.b16 %v388
    %v478 = vunpack.c.l.b16 %v389
    %v479 = vunpack.c.h.b16 %v389
    %v480 = vunpack.c.l.b16 %v390
    %v481 = vunpack.c.l.b16 %v391
    %v482 = vunpack.c.h.b16 %v391
    %v483 = vunpack.c.l.b16 %v392
    %v484 = vunpack.c.l.b16 %v393
    %v485 = vunpack.c.h.b16 %v393
    %v486 = vunpack.c.l.b16 %v394
    %v487 = vunpack.c.l.b16 %v395
    %v488 = vunpack.c.h.b16 %v395
    %v489 = vunpack.c.l.b16 %v396
    %v490 = vunpack.c.l.b16 %v397
    %v491 = vunpack.c.h.b16 %v397
    %v492 = vunpack.c.l.b16 %v398
    %v493 = vunpack.c.l.b16 %v399
    %v494 = vunpack.c.h.b16 %v399
    %v495 = vunpack.c.l.b16 %v400
    %v496 = vunpack.c.l.b16 %v401
    %v497 = vunpack.c.h.b16 %v401
    %v498 = vunpack.c.l.b16 %v402
    %v499 = vpack.c.b16 %v454, %v451
    %v500 = vpack.c.b16 %v455, %v452
    %v501 = vpack.c.b16 %v456, %v453
    %v502 = vpack.c.b16 %v460, %v457
    %v503 = vpack.c.b16 %v461, %v458
    %v504 = vpack.c.b16 %v462, %v459
    %v505 = vpack.c.b16 %v466, %v463
    %v506 = vpack.c.b16 %v467, %v464
    %v507 = vpack.c.b16 %v468, %v465
    %v508 = vpack.c.b16 %v472, %v469
    %v509 = vpack.c.b16 %v473, %v470
    %v510 = vpack.c.b16 %v474, %v471
    %v511 = vpack.c.b16 %v478, %v475
    %v512 = vpack.c.b16 %v479, %v476
    %v513 = vpack.c.b16 %v480, %v477
    %v514 = vpack.c.b16 %v484, %v481
    %v515 = vpack.c.b16 %v485, %v482
    %v516 = vpack.c.b16 %v486, %v483
    %v517 = vpack.c.b16 %v490, %v487
    %v518 = vpack.c.b16 %v491, %v488
    %v519 = vpack.c.b16 %v492, %v489
    %v520 = vpack.c.b16 %v496, %v493
    %v521 = vpack.c.b16 %v497, %v494
    %v522 = vpack.c.b16 %v498, %v495
    %547 = vmatpush.bf16.msra.mxu0 %v520
    %548 = vmatpush.bf16.msra.mxu0 %v517
    %549 = vmatpush.bf16.msra.mxu0 %v514
    %550 = vmatpush.bf16.msra.mxu0 %v511
    %551 = vmatpush.bf16.msra.mxu0 %v508
    %552 = vmatpush.bf16.msra.mxu0 %v505
    %553 = vmatpush.bf16.msra.mxu0 %v502
    %554 = vmatpush.bf16.msra.mxu0 %v499
    %555 = vmatmul.bf16.gmra.mxu0 %v418
    %v556 = vpop.f32.mrf.mxu0
    %v557 = vadd.f32 0.0, %v556
    %v558 = vpop.f32.mrf.mxu0
    %v559 = vadd.f32 0.0, %v558
    %560 = vdwg.mxu0
    %561 = vmatpush.bf16.msra.mxu0 %v521
    %562 = vmatpush.bf16.msra.mxu0 %v518
    %563 = vmatpush.bf16.msra.mxu0 %v515
    %564 = vmatpush.bf16.msra.mxu0 %v512
    %565 = vmatpush.bf16.msra.mxu0 %v509
    %566 = vmatpush.bf16.msra.mxu0 %v506
    %567 = vmatpush.bf16.msra.mxu0 %v503
    %568 = vmatpush.bf16.msra.mxu0 %v500
    %569 = vmatmul.bf16.gmra.mxu0 %v418
    %v570 = vpop.f32.mrf.mxu0
    %v571 = vadd.f32 0.0, %v570
    %v572 = vpop.f32.mrf.mxu0
    %v573 = vadd.f32 0.0, %v572
    %574 = vdwg.mxu0
    %575 = vmatpush.bf16.msra.mxu0 %v522
    %576 = vmatpush.bf16.msra.mxu0 %v519
    %577 = vmatpush.bf16.msra.mxu0 %v516
    %578 = vmatpush.bf16.msra.mxu0 %v513
    %579 = vmatpush.bf16.msra.mxu0 %v510
    %580 = vmatpush.bf16.msra.mxu0 %v507
    %581 = vmatpush.bf16.msra.mxu0 %v504
    %582 = vmatpush.bf16.msra.mxu0 %v501
    %583 = vmatmul.bf16.gmra.mxu0 %v418
    %v584 = vpop.f32.mrf.mxu0
    %v585 = vadd.f32 0.0, %v584
    %v586 = vpop.f32.mrf.mxu0
    %v587 = vadd.f32 0.0, %v586
    %588 = vdwg.mxu0
    %v589 = vadd.f32 %v412, %v557
    %v590 = vadd.f32 %v415, %v559
    %v591 = vxor.u32 %v589, 2147483648
    %v592 = vxor.u32 %v590, 2147483648
    %v593 = vmul.f32 %v591, 1.442695
    %v594 = vpow.pop %v593
    %v595 = vmul.f32 %v592, 1.442695
    %v596 = vpow.pop %v595
    %v597 = vadd.f32 %v594, 1.0
    %v598 = vadd.f32 %v596, 1.0
    %v599 = vrcp.pop %v597
    %v600 = vmul.f32 %v597, %v599
    %v601 = vsub.f32 1.0, %v600
    %v602 = vmul.f32 %v599, %v601
    %v603 = vadd.f32 %v599, %v602
    %vm604 = vweird.f32 %v597
    %vm605 = vweird.f32 %v599
    %vm606 = vmor %vm604, %vm605
    %v607 = vsel %vm606, %v599, %v603
    %v608 = vand.u32 2147483647, %v597
    %vm609 = vcmp.eq.f32.partialorder %v608, 8.507059e+37
    %v610 = vand.u32 %v597, 2147483648
    %v611 = vor.u32 1.1754944e-38, %v610
    %v612 = vsel %vm609, %v611, %v607
    %v613 = vmul.f32 1.0, %v612
    %v614 = vrcp.pop %v598
    %v615 = vmul.f32 %v598, %v614
    %v616 = vsub.f32 1.0, %v615
    %v617 = vmul.f32 %v614, %v616
    %v618 = vadd.f32 %v614, %v617
    %vm619 = vweird.f32 %v598
    %vm620 = vweird.f32 %v614
    %vm621 = vmor %vm619, %vm620
    %v622 = vsel %vm621, %v614, %v618
    %v623 = vand.u32 2147483647, %v598
    %vm624 = vcmp.eq.f32.partialorder %v623, 8.507059e+37
    %v625 = vand.u32 %v598, 2147483648
    %v626 = vor.u32 1.1754944e-38, %v625
    %v627 = vsel %vm624, %v626, %v622
    %v628 = vmul.f32 1.0, %v627
    %v629 = vadd.f32 %v413, %v571
    %v630 = vadd.f32 %v416, %v573
    %v631 = vxor.u32 %v629, 2147483648
    %v632 = vxor.u32 %v630, 2147483648
    %v633 = vmul.f32 %v631, 1.442695
    %v634 = vpow.pop %v633
    %v635 = vmul.f32 %v632, 1.442695
    %v636 = vpow.pop %v635
    %v637 = vadd.f32 %v634, 1.0
    %v638 = vadd.f32 %v636, 1.0
    %v639 = vrcp.pop %v637
    %v640 = vmul.f32 %v637, %v639
    %v641 = vsub.f32 1.0, %v640
    %v642 = vmul.f32 %v639, %v641
    %v643 = vadd.f32 %v639, %v642
    %vm644 = vweird.f32 %v637
    %vm645 = vweird.f32 %v639
    %vm646 = vmor %vm644, %vm645
    %v647 = vsel %vm646, %v639, %v643
    %v648 = vand.u32 2147483647, %v637
    %vm649 = vcmp.eq.f32.partialorder %v648, 8.507059e+37
    %v650 = vand.u32 %v637, 2147483648
    %v651 = vor.u32 1.1754944e-38, %v650
    %v652 = vsel %vm649, %v651, %v647
    %v653 = vmul.f32 1.0, %v652
    %v654 = vrcp.pop %v638
    %v655 = vmul.f32 %v638, %v654
    %v656 = vsub.f32 1.0, %v655
    %v657 = vmul.f32 %v654, %v656
    %v658 = vadd.f32 %v654, %v657
    %vm659 = vweird.f32 %v638
    %vm660 = vweird.f32 %v654
    %vm661 = vmor %vm659, %vm660
    %v662 = vsel %vm661, %v654, %v658
    %v663 = vand.u32 2147483647, %v638
    %vm664 = vcmp.eq.f32.partialorder %v663, 8.507059e+37
    %v665 = vand.u32 %v638, 2147483648
    %v666 = vor.u32 1.1754944e-38, %v665
    %v667 = vsel %vm664, %v666, %v662
    %v668 = vmul.f32 1.0, %v667
    %v669 = vadd.f32 %v585, %v405
    %v670 = vadd.f32 %v587, %v405
    %v671 = vmul.f32 %v613, %v669
    %v672 = vmul.f32 %v628, %v670
    %v673 = vadd.f32 %v414, %v671
    %v674 = vadd.f32 %v417, %v672
    %v675 = vtanh.pop %v673
    %v676 = vtanh.pop %v674
    %v677 = vsub.f32 1.0, %v653
    %v678 = vsub.f32 1.0, %v668
    %v679 = vmul.f32 %v677, %v675
    %v680 = vmul.f32 %v678, %v676
    %v681 = vmul.f32 %v653, %v407
    %v682 = vmul.f32 %v668, %v408
    %v683 = vadd.f32 %v679, %v681
    %v684 = vadd.f32 %v680, %v682
    %v685 = vpack.c.bf16 %v683, %v683
    %v686 = vpack.c.bf16 %v684, %v684
    %687 = vst [vmem:[#allocation7] sm:$0xf] %v685
    %688 = vst [vmem:[#allocation7 + $0x4] sm:$0xf] %v686
    %s689 = smul.u32 2, 3
    %s690 = smul.addr %s689, 8
    %s691 = scalar_lea.vmem [#allocation3], %s690
    %v692 = vld [vmem:[%s691] sm:$0xff]
    %v693 = vld [vmem:[%s691 + $0x8] sm:$0xff]
    %v694 = vld [vmem:[%s691 + $0x10] sm:$0xff]
    %v695 = vld [vmem:[%s691 + $0x18] sm:$0xff]
    %v696 = vld [vmem:[%s691 + $0x20] sm:$0xff]
    %v697 = vld [vmem:[%s691 + $0x28] sm:$0xff]
    %v700 = vunpack.c.l.b16 %v685
    %v701 = vunpack.c.l.b16 %v686
    %v702 = vpack.c.b16 %v701, %v700
    %704 = vmatpush.bf16.msra.mxu0 %v520
    %705 = vmatpush.bf16.msra.mxu0 %v517
    %706 = vmatpush.bf16.msra.mxu0 %v514
    %707 = vmatpush.bf16.msra.mxu0 %v511
    %708 = vmatpush.bf16.msra.mxu0 %v508
    %709 = vmatpush.bf16.msra.mxu0 %v505
    %710 = vmatpush.bf16.msra.mxu0 %v502
    %711 = vmatpush.bf16.msra.mxu0 %v499
    %712 = vmatmul.bf16.gmra.mxu0 %v702
    %v713 = vpop.f32.mrf.mxu0
    %v714 = vadd.f32 0.0, %v713
    %v715 = vpop.f32.mrf.mxu0
    %v716 = vadd.f32 0.0, %v715
    %717 = vdwg.mxu0
    %718 = vmatpush.bf16.msra.mxu0 %v521
    %719 = vmatpush.bf16.msra.mxu0 %v518
    %720 = vmatpush.bf16.msra.mxu0 %v515
    %721 = vmatpush.bf16.msra.mxu0 %v512
    %722 = vmatpush.bf16.msra.mxu0 %v509
    %723 = vmatpush.bf16.msra.mxu0 %v506
    %724 = vmatpush.bf16.msra.mxu0 %v503
    %725 = vmatpush.bf16.msra.mxu0 %v500
    %726 = vmatmul.bf16.gmra.mxu0 %v702
    %v727 = vpop.f32.mrf.mxu0
    %v728 = vadd.f32 0.0, %v727
    %v729 = vpop.f32.mrf.mxu0
    %v730 = vadd.f32 0.0, %v729
    %731 = vdwg.mxu0
    %732 = vmatpush.bf16.msra.mxu0 %v522
    %733 = vmatpush.bf16.msra.mxu0 %v519
    %734 = vmatpush.bf16.msra.mxu0 %v516
    %735 = vmatpush.bf16.msra.mxu0 %v513
    %736 = vmatpush.bf16.msra.mxu0 %v510
    %737 = vmatpush.bf16.msra.mxu0 %v507
    %738 = vmatpush.bf16.msra.mxu0 %v504
    %739 = vmatpush.bf16.msra.mxu0 %v501
    %740 = vmatmul.bf16.gmra.mxu0 %v702
    %v741 = vpop.f32.mrf.mxu0
    %v742 = vadd.f32 0.0, %v741
    %v743 = vpop.f32.mrf.mxu0
    %v744 = vadd.f32 0.0, %v743
    %745 = vdwg.mxu0
    %v746 = vadd.f32 %v692, %v714
    %v747 = vadd.f32 %v695, %v716
    %v748 = vxor.u32 %v746, 2147483648
    %v749 = vxor.u32 %v747, 2147483648
    %v750 = vmul.f32 %v748, 1.442695
    %v751 = vpow.pop %v750
    %v752 = vmul.f32 %v749, 1.442695
    %v753 = vpow.pop %v752
    %v754 = vadd.f32 %v751, 1.0
    %v755 = vadd.f32 %v753, 1.0
    %v756 = vrcp.pop %v754
    %v757 = vmul.f32 %v754, %v756
    %v758 = vsub.f32 1.0, %v757
    %v759 = vmul.f32 %v756, %v758
    %v760 = vadd.f32 %v756, %v759
    %vm761 = vweird.f32 %v754
    %vm762 = vweird.f32 %v756
    %vm763 = vmor %vm761, %vm762
    %v764 = vsel %vm763, %v756, %v760
    %v765 = vand.u32 2147483647, %v754
    %vm766 = vcmp.eq.f32.partialorder %v765, 8.507059e+37
    %v767 = vand.u32 %v754, 2147483648
    %v768 = vor.u32 1.1754944e-38, %v767
    %v769 = vsel %vm766, %v768, %v764
    %v770 = vmul.f32 1.0, %v769
    %v771 = vrcp.pop %v755
    %v772 = vmul.f32 %v755, %v771
    %v773 = vsub.f32 1.0, %v772
    %v774 = vmul.f32 %v771, %v773
    %v775 = vadd.f32 %v771, %v774
    %vm776 = vweird.f32 %v755
    %vm777 = vweird.f32 %v771
    %vm778 = vmor %vm776, %vm777
    %v779 = vsel %vm778, %v771, %v775
    %v780 = vand.u32 2147483647, %v755
    %vm781 = vcmp.eq.f32.partialorder %v780, 8.507059e+37
    %v782 = vand.u32 %v755, 2147483648
    %v783 = vor.u32 1.1754944e-38, %v782
    %v784 = vsel %vm781, %v783, %v779
    %v785 = vmul.f32 1.0, %v784
    %v786 = vadd.f32 %v693, %v728
    %v787 = vadd.f32 %v696, %v730
    %v788 = vxor.u32 %v786, 2147483648
    %v789 = vxor.u32 %v787, 2147483648
    %v790 = vmul.f32 %v788, 1.442695
    %v791 = vpow.pop %v790
    %v792 = vmul.f32 %v789, 1.442695
    %v793 = vpow.pop %v792
    %v794 = vadd.f32 %v791, 1.0
    %v795 = vadd.f32 %v793, 1.0
    %v796 = vrcp.pop %v794
    %v797 = vmul.f32 %v794, %v796
    %v798 = vsub.f32 1.0, %v797
    %v799 = vmul.f32 %v796, %v798
    %v800 = vadd.f32 %v796, %v799
    %vm801 = vweird.f32 %v794
    %vm802 = vweird.f32 %v796
    %vm803 = vmor %vm801, %vm802
    %v804 = vsel %vm803, %v796, %v800
    %v805 = vand.u32 2147483647, %v794
    %vm806 = vcmp.eq.f32.partialorder %v805, 8.507059e+37
    %v807 = vand.u32 %v794, 2147483648
    %v808 = vor.u32 1.1754944e-38, %v807
    %v809 = vsel %vm806, %v808, %v804
    %v810 = vmul.f32 1.0, %v809
    %v811 = vrcp.pop %v795
    %v812 = vmul.f32 %v795, %v811
    %v813 = vsub.f32 1.0, %v812
    %v814 = vmul.f32 %v811, %v813
    %v815 = vadd.f32 %v811, %v814
    %vm816 = vweird.f32 %v795
    %vm817 = vweird.f32 %v811
    %vm818 = vmor %vm816, %vm817
    %v819 = vsel %vm818, %v811, %v815
    %v820 = vand.u32 2147483647, %v795
    %vm821 = vcmp.eq.f32.partialorder %v820, 8.507059e+37
    %v822 = vand.u32 %v795, 2147483648
    %v823 = vor.u32 1.1754944e-38, %v822
    %v824 = vsel %vm821, %v823, %v819
    %v825 = vmul.f32 1.0, %v824
    %v826 = vadd.f32 %v742, %v405
    %v827 = vadd.f32 %v744, %v405
    %v828 = vmul.f32 %v770, %v826
    %v829 = vmul.f32 %v785, %v827
    %v830 = vadd.f32 %v694, %v828
    %v831 = vadd.f32 %v697, %v829
    %v832 = vtanh.pop %v830
    %v833 = vtanh.pop %v831
    %v834 = vsub.f32 1.0, %v810
    %v835 = vsub.f32 1.0, %v825
    %v836 = vmul.f32 %v834, %v832
    %v837 = vmul.f32 %v835, %v833
    %v838 = vmul.f32 %v810, %v683
    %v839 = vmul.f32 %v825, %v684
    %v840 = vadd.f32 %v836, %v838
    %v841 = vadd.f32 %v837, %v839
    %v842 = vpack.c.bf16 %v840, %v840
    %v843 = vpack.c.bf16 %v841, %v841
    %s844 = scalar_lea.vmem [#allocation7], 8
    %845 = vst [vmem:[%s844] sm:$0xf] %v842
    %846 = vst [vmem:[%s844 + $0x4] sm:$0xf] %v843
    %s847 = smul.u32 4, 3
    %s848 = smul.addr %s847, 8
    %s849 = scalar_lea.vmem [#allocation3], %s848
    %v850 = vld [vmem:[%s849] sm:$0xff]
    %v851 = vld [vmem:[%s849 + $0x8] sm:$0xff]
    %v852 = vld [vmem:[%s849 + $0x10] sm:$0xff]
    %v853 = vld [vmem:[%s849 + $0x18] sm:$0xff]
    %v854 = vld [vmem:[%s849 + $0x20] sm:$0xff]
    %v855 = vld [vmem:[%s849 + $0x28] sm:$0xff]
    %v858 = vunpack.c.l.b16 %v842
    %v859 = vunpack.c.l.b16 %v843
    %v860 = vpack.c.b16 %v859, %v858
    %862 = vmatpush.bf16.msra.mxu0 %v520
    %863 = vmatpush.bf16.msra.mxu0 %v517
    %864 = vmatpush.bf16.msra.mxu0 %v514
    %865 = vmatpush.bf16.msra.mxu0 %v511
    %866 = vmatpush.bf16.msra.mxu0 %v508
    %867 = vmatpush.bf16.msra.mxu0 %v505
    %868 = vmatpush.bf16.msra.mxu0 %v502
    %869 = vmatpush.bf16.msra.mxu0 %v499
    %870 = vmatmul.bf16.gmra.mxu0 %v860
    %v871 = vpop.f32.mrf.mxu0
    %v872 = vadd.f32 0.0, %v871
    %v873 = vpop.f32.mrf.mxu0
    %v874 = vadd.f32 0.0, %v873
    %875 = vdwg.mxu0
    %876 = vmatpush.bf16.msra.mxu0 %v521
    %877 = vmatpush.bf16.msra.mxu0 %v518
    %878 = vmatpush.bf16.msra.mxu0 %v515
    %879 = vmatpush.bf16.msra.mxu0 %v512
    %880 = vmatpush.bf16.msra.mxu0 %v509
    %881 = vmatpush.bf16.msra.mxu0 %v506
    %882 = vmatpush.bf16.msra.mxu0 %v503
    %883 = vmatpush.bf16.msra.mxu0 %v500
    %884 = vmatmul.bf16.gmra.mxu0 %v860
    %v885 = vpop.f32.mrf.mxu0
    %v886 = vadd.f32 0.0, %v885
    %v887 = vpop.f32.mrf.mxu0
    %v888 = vadd.f32 0.0, %v887
    %889 = vdwg.mxu0
    %890 = vmatpush.bf16.msra.mxu0 %v522
    %891 = vmatpush.bf16.msra.mxu0 %v519
    %892 = vmatpush.bf16.msra.mxu0 %v516
    %893 = vmatpush.bf16.msra.mxu0 %v513
    %894 = vmatpush.bf16.msra.mxu0 %v510
    %895 = vmatpush.bf16.msra.mxu0 %v507
    %896 = vmatpush.bf16.msra.mxu0 %v504
    %897 = vmatpush.bf16.msra.mxu0 %v501
    %898 = vmatmul.bf16.gmra.mxu0 %v860
    %v899 = vpop.f32.mrf.mxu0
    %v900 = vadd.f32 0.0, %v899
    %v901 = vpop.f32.mrf.mxu0
    %v902 = vadd.f32 0.0, %v901
    %903 = vdwg.mxu0
    %v904 = vadd.f32 %v850, %v872
    %v905 = vadd.f32 %v853, %v874
    %v906 = vxor.u32 %v904, 2147483648
    %v907 = vxor.u32 %v905, 2147483648
    %v908 = vmul.f32 %v906, 1.442695
    %v909 = vpow.pop %v908
    %v910 = vmul.f32 %v907, 1.442695
    %v911 = vpow.pop %v910
    %v912 = vadd.f32 %v909, 1.0
    %v913 = vadd.f32 %v911, 1.0
    %v914 = vrcp.pop %v912
    %v915 = vmul.f32 %v912, %v914
    %v916 = vsub.f32 1.0, %v915
    %v917 = vmul.f32 %v914, %v916
    %v918 = vadd.f32 %v914, %v917
    %vm919 = vweird.f32 %v912
    %vm920 = vweird.f32 %v914
    %vm921 = vmor %vm919, %vm920
    %v922 = vsel %vm921, %v914, %v918
    %v923 = vand.u32 2147483647, %v912
    %vm924 = vcmp.eq.f32.partialorder %v923, 8.507059e+37
    %v925 = vand.u32 %v912, 2147483648
    %v926 = vor.u32 1.1754944e-38, %v925
    %v927 = vsel %vm924, %v926, %v922
    %v928 = vmul.f32 1.0, %v927
    %v929 = vrcp.pop %v913
    %v930 = vmul.f32 %v913, %v929
    %v931 = vsub.f32 1.0, %v930
    %v932 = vmul.f32 %v929, %v931
    %v933 = vadd.f32 %v929, %v932
    %vm934 = vweird.f32 %v913
    %vm935 = vweird.f32 %v929
    %vm936 = vmor %vm934, %vm935
    %v937 = vsel %vm936, %v929, %v933
    %v938 = vand.u32 2147483647, %v913
    %vm939 = vcmp.eq.f32.partialorder %v938, 8.507059e+37
    %v940 = vand.u32 %v913, 2147483648
    %v941 = vor.u32 1.1754944e-38, %v940
    %v942 = vsel %vm939, %v941, %v937
    %v943 = vmul.f32 1.0, %v942
    %v944 = vadd.f32 %v851, %v886
    %v945 = vadd.f32 %v854, %v888
    %v946 = vxor.u32 %v944, 2147483648
    %v947 = vxor.u32 %v945, 2147483648
    %v948 = vmul.f32 %v946, 1.442695
    %v949 = vpow.pop %v948
    %v950 = vmul.f32 %v947, 1.442695
    %v951 = vpow.pop %v950
    %v952 = vadd.f32 %v949, 1.0
    %v953 = vadd.f32 %v951, 1.0
    %v954 = vrcp.pop %v952
    %v955 = vmul.f32 %v952, %v954
    %v956 = vsub.f32 1.0, %v955
    %v957 = vmul.f32 %v954, %v956
    %v958 = vadd.f32 %v954, %v957
    %vm959 = vweird.f32 %v952
    %vm960 = vweird.f32 %v954
    %vm961 = vmor %vm959, %vm960
    %v962 = vsel %vm961, %v954, %v958
    %v963 = vand.u32 2147483647, %v952
    %vm964 = vcmp.eq.f32.partialorder %v963, 8.507059e+37
    %v965 = vand.u32 %v952, 2147483648
    %v966 = vor.u32 1.1754944e-38, %v965
    %v967 = vsel %vm964, %v966, %v962
    %v968 = vmul.f32 1.0, %v967
    %v969 = vrcp.pop %v953
    %v970 = vmul.f32 %v953, %v969
    %v971 = vsub.f32 1.0, %v970
    %v972 = vmul.f32 %v969, %v971
    %v973 = vadd.f32 %v969, %v972
    %vm974 = vweird.f32 %v953
    %vm975 = vweird.f32 %v969
    %vm976 = vmor %vm974, %vm975
    %v977 = vsel %vm976, %v969, %v973
    %v978 = vand.u32 2147483647, %v953
    %vm979 = vcmp.eq.f32.partialorder %v978, 8.507059e+37
    %v980 = vand.u32 %v953, 2147483648
    %v981 = vor.u32 1.1754944e-38, %v980
    %v982 = vsel %vm979, %v981, %v977
    %v983 = vmul.f32 1.0, %v982
    %v984 = vadd.f32 %v900, %v405
    %v985 = vadd.f32 %v902, %v405
    %v986 = vmul.f32 %v928, %v984
    %v987 = vmul.f32 %v943, %v985
    %v988 = vadd.f32 %v852, %v986
    %v989 = vadd.f32 %v855, %v987
    %v990 = vtanh.pop %v988
    %v991 = vtanh.pop %v989
    %v992 = vsub.f32 1.0, %v968
    %v993 = vsub.f32 1.0, %v983
    %v994 = vmul.f32 %v992, %v990
    %v995 = vmul.f32 %v993, %v991
    %v996 = vmul.f32 %v968, %v840
    %v997 = vmul.f32 %v983, %v841
    %v998 = vadd.f32 %v994, %v996
    %v999 = vadd.f32 %v995, %v997
    %v1000 = vpack.c.bf16 %v998, %v998
    %v1001 = vpack.c.bf16 %v999, %v999
    %s1002 = scalar_lea.vmem [#allocation7], 16
    %1003 = vst [vmem:[%s1002] sm:$0xf] %v1000
    %1004 = vst [vmem:[%s1002 + $0x4] sm:$0xf] %v1001
    %s1005 = smul.u32 6, 3
    %s1006 = smul.addr %s1005, 8
    %s1007 = scalar_lea.vmem [#allocation3], %s1006
    %v1008 = vld [vmem:[%s1007] sm:$0xff]
    %v1009 = vld [vmem:[%s1007 + $0x8] sm:$0xff]
    %v1010 = vld [vmem:[%s1007 + $0x10] sm:$0xff]
    %v1011 = vld [vmem:[%s1007 + $0x18] sm:$0xff]
    %v1012 = vld [vmem:[%s1007 + $0x20] sm:$0xff]
    %v1013 = vld [vmem:[%s1007 + $0x28] sm:$0xff]
    %v1016 = vunpack.c.l.b16 %v1000
    %v1017 = vunpack.c.l.b16 %v1001
    %v1018 = vpack.c.b16 %v1017, %v1016
    %1020 = vmatpush.bf16.msra.mxu0 %v520
    %1021 = vmatpush.bf16.msra.mxu0 %v517
    %1022 = vmatpush.bf16.msra.mxu0 %v514
    %1023 = vmatpush.bf16.msra.mxu0 %v511
    %1024 = vmatpush.bf16.msra.mxu0 %v508
    %1025 = vmatpush.bf16.msra.mxu0 %v505
    %1026 = vmatpush.bf16.msra.mxu0 %v502
    %1027 = vmatpush.bf16.msra.mxu0 %v499
    %1028 = vmatmul.bf16.gmra.mxu0 %v1018
    %v1029 = vpop.f32.mrf.mxu0
    %v1030 = vadd.f32 0.0, %v1029
    %v1031 = vpop.f32.mrf.mxu0
    %v1032 = vadd.f32 0.0, %v1031
    %1033 = vdwg.mxu0
    %1034 = vmatpush.bf16.msra.mxu0 %v521
    %1035 = vmatpush.bf16.msra.mxu0 %v518
    %1036 = vmatpush.bf16.msra.mxu0 %v515
    %1037 = vmatpush.bf16.msra.mxu0 %v512
    %1038 = vmatpush.bf16.msra.mxu0 %v509
    %1039 = vmatpush.bf16.msra.mxu0 %v506
    %1040 = vmatpush.bf16.msra.mxu0 %v503
    %1041 = vmatpush.bf16.msra.mxu0 %v500
    %1042 = vmatmul.bf16.gmra.mxu0 %v1018
    %v1043 = vpop.f32.mrf.mxu0
    %v1044 = vadd.f32 0.0, %v1043
    %v1045 = vpop.f32.mrf.mxu0
    %v1046 = vadd.f32 0.0, %v1045
    %1047 = vdwg.mxu0
    %1048 = vmatpush.bf16.msra.mxu0 %v522
    %1049 = vmatpush.bf16.msra.mxu0 %v519
    %1050 = vmatpush.bf16.msra.mxu0 %v516
    %1051 = vmatpush.bf16.msra.mxu0 %v513
    %1052 = vmatpush.bf16.msra.mxu0 %v510
    %1053 = vmatpush.bf16.msra.mxu0 %v507
    %1054 = vmatpush.bf16.msra.mxu0 %v504
    %1055 = vmatpush.bf16.msra.mxu0 %v501
    %1056 = vmatmul.bf16.gmra.mxu0 %v1018
    %v1057 = vpop.f32.mrf.mxu0
    %v1058 = vadd.f32 0.0, %v1057
    %v1059 = vpop.f32.mrf.mxu0
    %v1060 = vadd.f32 0.0, %v1059
    %1061 = vdwg.mxu0
    %v1062 = vadd.f32 %v1008, %v1030
    %v1063 = vadd.f32 %v1011, %v1032
    %v1064 = vxor.u32 %v1062, 2147483648
    %v1065 = vxor.u32 %v1063, 2147483648
    %v1066 = vmul.f32 %v1064, 1.442695
    %v1067 = vpow.pop %v1066
    %v1068 = vmul.f32 %v1065, 1.442695
    %v1069 = vpow.pop %v1068
    %v1070 = vadd.f32 %v1067, 1.0
    %v1071 = vadd.f32 %v1069, 1.0
    %v1072 = vrcp.pop %v1070
    %v1073 = vmul.f32 %v1070, %v1072
    %v1074 = vsub.f32 1.0, %v1073
    %v1075 = vmul.f32 %v1072, %v1074
    %v1076 = vadd.f32 %v1072, %v1075
    %vm1077 = vweird.f32 %v1070
    %vm1078 = vweird.f32 %v1072
    %vm1079 = vmor %vm1077, %vm1078
    %v1080 = vsel %vm1079, %v1072, %v1076
    %v1081 = vand.u32 2147483647, %v1070
    %vm1082 = vcmp.eq.f32.partialorder %v1081, 8.507059e+37
    %v1083 = vand.u32 %v1070, 2147483648
    %v1084 = vor.u32 1.1754944e-38, %v1083
    %v1085 = vsel %vm1082, %v1084, %v1080
    %v1086 = vmul.f32 1.0, %v1085
    %v1087 = vrcp.pop %v1071
    %v1088 = vmul.f32 %v1071, %v1087
    %v1089 = vsub.f32 1.0, %v1088
    %v1090 = vmul.f32 %v1087, %v1089
    %v1091 = vadd.f32 %v1087, %v1090
    %vm1092 = vweird.f32 %v1071
    %vm1093 = vweird.f32 %v1087
    %vm1094 = vmor %vm1092, %vm1093
    %v1095 = vsel %vm1094, %v1087, %v1091
    %v1096 = vand.u32 2147483647, %v1071
    %vm1097 = vcmp.eq.f32.partialorder %v1096, 8.507059e+37
    %v1098 = vand.u32 %v1071, 2147483648
    %v1099 = vor.u32 1.1754944e-38, %v1098
    %v1100 = vsel %vm1097, %v1099, %v1095
    %v1101 = vmul.f32 1.0, %v1100
    %v1102 = vadd.f32 %v1009, %v1044
    %v1103 = vadd.f32 %v1012, %v1046
    %v1104 = vxor.u32 %v1102, 2147483648
    %v1105 = vxor.u32 %v1103, 2147483648
    %v1106 = vmul.f32 %v1104, 1.442695
    %v1107 = vpow.pop %v1106
    %v1108 = vmul.f32 %v1105, 1.442695
    %v1109 = vpow.pop %v1108
    %v1110 = vadd.f32 %v1107, 1.0
    %v1111 = vadd.f32 %v1109, 1.0
    %v1112 = vrcp.pop %v1110
    %v1113 = vmul.f32 %v1110, %v1112
    %v1114 = vsub.f32 1.0, %v1113
    %v1115 = vmul.f32 %v1112, %v1114
    %v1116 = vadd.f32 %v1112, %v1115
    %vm1117 = vweird.f32 %v1110
    %vm1118 = vweird.f32 %v1112
    %vm1119 = vmor %vm1117, %vm1118
    %v1120 = vsel %vm1119, %v1112, %v1116
    %v1121 = vand.u32 2147483647, %v1110
    %vm1122 = vcmp.eq.f32.partialorder %v1121, 8.507059e+37
    %v1123 = vand.u32 %v1110, 2147483648
    %v1124 = vor.u32 1.1754944e-38, %v1123
    %v1125 = vsel %vm1122, %v1124, %v1120
    %v1126 = vmul.f32 1.0, %v1125
    %v1127 = vrcp.pop %v1111
    %v1128 = vmul.f32 %v1111, %v1127
    %v1129 = vsub.f32 1.0, %v1128
    %v1130 = vmul.f32 %v1127, %v1129
    %v1131 = vadd.f32 %v1127, %v1130
    %vm1132 = vweird.f32 %v1111
    %vm1133 = vweird.f32 %v1127
    %vm1134 = vmor %vm1132, %vm1133
    %v1135 = vsel %vm1134, %v1127, %v1131
    %v1136 = vand.u32 2147483647, %v1111
    %vm1137 = vcmp.eq.f32.partialorder %v1136, 8.507059e+37
    %v1138 = vand.u32 %v1111, 2147483648
    %v1139 = vor.u32 1.1754944e-38, %v1138
    %v1140 = vsel %vm1137, %v1139, %v1135
    %v1141 = vmul.f32 1.0, %v1140
    %v1142 = vadd.f32 %v1058, %v405
    %v1143 = vadd.f32 %v1060, %v405
    %v1144 = vmul.f32 %v1086, %v1142
    %v1145 = vmul.f32 %v1101, %v1143
    %v1146 = vadd.f32 %v1010, %v1144
    %v1147 = vadd.f32 %v1013, %v1145
    %v1148 = vtanh.pop %v1146
    %v1149 = vtanh.pop %v1147
    %v1150 = vsub.f32 1.0, %v1126
    %v1151 = vsub.f32 1.0, %v1141
    %v1152 = vmul.f32 %v1150, %v1148
    %v1153 = vmul.f32 %v1151, %v1149
    %v1154 = vmul.f32 %v1126, %v998
    %v1155 = vmul.f32 %v1141, %v999
    %v1156 = vadd.f32 %v1152, %v1154
    %v1157 = vadd.f32 %v1153, %v1155
    %v1158 = vpack.c.bf16 %v1156, %v1156
    %v1159 = vpack.c.bf16 %v1157, %v1157
    %s1160 = scalar_lea.vmem [#allocation7], 24
    %1161 = vst [vmem:[%s1160] sm:$0xf] %v1158
    %1162 = vst [vmem:[%s1160 + $0x4] sm:$0xf] %v1159
    %s1163 = smul.u32 8, 3
    %s1164 = smul.addr %s1163, 8
    %s1165 = scalar_lea.vmem [#allocation3], %s1164
    %v1166 = vld [vmem:[%s1165] sm:$0xff]
    %v1167 = vld [vmem:[%s1165 + $0x8] sm:$0xff]
    %v1168 = vld [vmem:[%s1165 + $0x10] sm:$0xff]
    %v1169 = vld [vmem:[%s1165 + $0x18] sm:$0xff]
    %v1170 = vld [vmem:[%s1165 + $0x20] sm:$0xff]
    %v1171 = vld [vmem:[%s1165 + $0x28] sm:$0xff]
    %v1174 = vunpack.c.l.b16 %v1158
    %v1175 = vunpack.c.l.b16 %v1159
    %v1176 = vpack.c.b16 %v1175, %v1174
    %1178 = vmatpush.bf16.msra.mxu0 %v520
    %1179 = vmatpush.bf16.msra.mxu0 %v517
    %1180 = vmatpush.bf16.msra.mxu0 %v514
    %1181 = vmatpush.bf16.msra.mxu0 %v511
    %1182 = vmatpush.bf16.msra.mxu0 %v508
    %1183 = vmatpush.bf16.msra.mxu0 %v505
    %1184 = vmatpush.bf16.msra.mxu0 %v502
    %1185 = vmatpush.bf16.msra.mxu0 %v499
    %1186 = vmatmul.bf16.gmra.mxu0 %v1176
    %v1187 = vpop.f32.mrf.mxu0
    %v1188 = vadd.f32 0.0, %v1187
    %v1189 = vpop.f32.mrf.mxu0
    %v1190 = vadd.f32 0.0, %v1189
    %1191 = vdwg.mxu0
    %1192 = vmatpush.bf16.msra.mxu0 %v521
    %1193 = vmatpush.bf16.msra.mxu0 %v518
    %1194 = vmatpush.bf16.msra.mxu0 %v515
    %1195 = vmatpush.bf16.msra.mxu0 %v512
    %1196 = vmatpush.bf16.msra.mxu0 %v509
    %1197 = vmatpush.bf16.msra.mxu0 %v506
    %1198 = vmatpush.bf16.msra.mxu0 %v503
    %1199 = vmatpush.bf16.msra.mxu0 %v500
    %1200 = vmatmul.bf16.gmra.mxu0 %v1176
    %v1201 = vpop.f32.mrf.mxu0
    %v1202 = vadd.f32 0.0, %v1201
    %v1203 = vpop.f32.mrf.mxu0
    %v1204 = vadd.f32 0.0, %v1203
    %1205 = vdwg.mxu0
    %1206 = vmatpush.bf16.msra.mxu0 %v522
    %1207 = vmatpush.bf16.msra.mxu0 %v519
    %1208 = vmatpush.bf16.msra.mxu0 %v516
    %1209 = vmatpush.bf16.msra.mxu0 %v513
    %1210 = vmatpush.bf16.msra.mxu0 %v510
    %1211 = vmatpush.bf16.msra.mxu0 %v507
    %1212 = vmatpush.bf16.msra.mxu0 %v504
    %1213 = vmatpush.bf16.msra.mxu0 %v501
    %1214 = vmatmul.bf16.gmra.mxu0 %v1176
    %v1215 = vpop.f32.mrf.mxu0
    %v1216 = vadd.f32 0.0, %v1215
    %v1217 = vpop.f32.mrf.mxu0
    %v1218 = vadd.f32 0.0, %v1217
    %1219 = vdwg.mxu0
    %v1220 = vadd.f32 %v1166, %v1188
    %v1221 = vadd.f32 %v1169, %v1190
    %v1222 = vxor.u32 %v1220, 2147483648
    %v1223 = vxor.u32 %v1221, 2147483648
    %v1224 = vmul.f32 %v1222, 1.442695
    %v1225 = vpow.pop %v1224
    %v1226 = vmul.f32 %v1223, 1.442695
    %v1227 = vpow.pop %v1226
    %v1228 = vadd.f32 %v1225, 1.0
    %v1229 = vadd.f32 %v1227, 1.0
    %v1230 = vrcp.pop %v1228
    %v1231 = vmul.f32 %v1228, %v1230
    %v1232 = vsub.f32 1.0, %v1231
    %v1233 = vmul.f32 %v1230, %v1232
    %v1234 = vadd.f32 %v1230, %v1233
    %vm1235 = vweird.f32 %v1228
    %vm1236 = vweird.f32 %v1230
    %vm1237 = vmor %vm1235, %vm1236
    %v1238 = vsel %vm1237, %v1230, %v1234
    %v1239 = vand.u32 2147483647, %v1228
    %vm1240 = vcmp.eq.f32.partialorder %v1239, 8.507059e+37
    %v1241 = vand.u32 %v1228, 2147483648
    %v1242 = vor.u32 1.1754944e-38, %v1241
    %v1243 = vsel %vm1240, %v1242, %v1238
    %v1244 = vmul.f32 1.0, %v1243
    %v1245 = vrcp.pop %v1229
    %v1246 = vmul.f32 %v1229, %v1245
    %v1247 = vsub.f32 1.0, %v1246
    %v1248 = vmul.f32 %v1245, %v1247
    %v1249 = vadd.f32 %v1245, %v1248
    %vm1250 = vweird.f32 %v1229
    %vm1251 = vweird.f32 %v1245
    %vm1252 = vmor %vm1250, %vm1251
    %v1253 = vsel %vm1252, %v1245, %v1249
    %v1254 = vand.u32 2147483647, %v1229
    %vm1255 = vcmp.eq.f32.partialorder %v1254, 8.507059e+37
    %v1256 = vand.u32 %v1229, 2147483648
    %v1257 = vor.u32 1.1754944e-38, %v1256
    %v1258 = vsel %vm1255, %v1257, %v1253
    %v1259 = vmul.f32 1.0, %v1258
    %v1260 = vadd.f32 %v1167, %v1202
    %v1261 = vadd.f32 %v1170, %v1204
    %v1262 = vxor.u32 %v1260, 2147483648
    %v1263 = vxor.u32 %v1261, 2147483648
    %v1264 = vmul.f32 %v1262, 1.442695
    %v1265 = vpow.pop %v1264
    %v1266 = vmul.f32 %v1263, 1.442695
    %v1267 = vpow.pop %v1266
    %v1268 = vadd.f32 %v1265, 1.0
    %v1269 = vadd.f32 %v1267, 1.0
    %v1270 = vrcp.pop %v1268
    %v1271 = vmul.f32 %v1268, %v1270
    %v1272 = vsub.f32 1.0, %v1271
    %v1273 = vmul.f32 %v1270, %v1272
    %v1274 = vadd.f32 %v1270, %v1273
    %vm1275 = vweird.f32 %v1268
    %vm1276 = vweird.f32 %v1270
    %vm1277 = vmor %vm1275, %vm1276
    %v1278 = vsel %vm1277, %v1270, %v1274
    %v1279 = vand.u32 2147483647, %v1268
    %vm1280 = vcmp.eq.f32.partialorder %v1279, 8.507059e+37
    %v1281 = vand.u32 %v1268, 2147483648
    %v1282 = vor.u32 1.1754944e-38, %v1281
    %v1283 = vsel %vm1280, %v1282, %v1278
    %v1284 = vmul.f32 1.0, %v1283
    %v1285 = vrcp.pop %v1269
    %v1286 = vmul.f32 %v1269, %v1285
    %v1287 = vsub.f32 1.0, %v1286
    %v1288 = vmul.f32 %v1285, %v1287
    %v1289 = vadd.f32 %v1285, %v1288
    %vm1290 = vweird.f32 %v1269
    %vm1291 = vweird.f32 %v1285
    %vm1292 = vmor %vm1290, %vm1291
    %v1293 = vsel %vm1292, %v1285, %v1289
    %v1294 = vand.u32 2147483647, %v1269
    %vm1295 = vcmp.eq.f32.partialorder %v1294, 8.507059e+37
    %v1296 = vand.u32 %v1269, 2147483648
    %v1297 = vor.u32 1.1754944e-38, %v1296
    %v1298 = vsel %vm1295, %v1297, %v1293
    %v1299 = vmul.f32 1.0, %v1298
    %v1300 = vadd.f32 %v1216, %v405
    %v1301 = vadd.f32 %v1218, %v405
    %v1302 = vmul.f32 %v1244, %v1300
    %v1303 = vmul.f32 %v1259, %v1301
    %v1304 = vadd.f32 %v1168, %v1302
    %v1305 = vadd.f32 %v1171, %v1303
    %v1306 = vtanh.pop %v1304
    %v1307 = vtanh.pop %v1305
    %v1308 = vsub.f32 1.0, %v1284
    %v1309 = vsub.f32 1.0, %v1299
    %v1310 = vmul.f32 %v1308, %v1306
    %v1311 = vmul.f32 %v1309, %v1307
    %v1312 = vmul.f32 %v1284, %v1156
    %v1313 = vmul.f32 %v1299, %v1157
    %v1314 = vadd.f32 %v1310, %v1312
    %v1315 = vadd.f32 %v1311, %v1313
    %v1316 = vpack.c.bf16 %v1314, %v1314
    %v1317 = vpack.c.bf16 %v1315, %v1315
    %s1318 = scalar_lea.vmem [#allocation7], 32
    %1319 = vst [vmem:[%s1318] sm:$0xf] %v1316
    %1320 = vst [vmem:[%s1318 + $0x4] sm:$0xf] %v1317
    %s1321 = smul.u32 10, 3
    %s1322 = smul.addr %s1321, 8
    %s1323 = scalar_lea.vmem [#allocation3], %s1322
    %v1324 = vld [vmem:[%s1323] sm:$0xff]
    %v1325 = vld [vmem:[%s1323 + $0x8] sm:$0xff]
    %v1326 = vld [vmem:[%s1323 + $0x10] sm:$0xff]
    %v1327 = vld [vmem:[%s1323 + $0x18] sm:$0xff]
    %v1328 = vld [vmem:[%s1323 + $0x20] sm:$0xff]
    %v1329 = vld [vmem:[%s1323 + $0x28] sm:$0xff]
    %v1332 = vunpack.c.l.b16 %v1316
    %v1333 = vunpack.c.l.b16 %v1317
    %v1334 = vpack.c.b16 %v1333, %v1332
    %1336 = vmatpush.bf16.msra.mxu0 %v520
    %1337 = vmatpush.bf16.msra.mxu0 %v517
    %1338 = vmatpush.bf16.msra.mxu0 %v514
    %1339 = vmatpush.bf16.msra.mxu0 %v511
    %1340 = vmatpush.bf16.msra.mxu0 %v508
    %1341 = vmatpush.bf16.msra.mxu0 %v505
    %1342 = vmatpush.bf16.msra.mxu0 %v502
    %1343 = vmatpush.bf16.msra.mxu0 %v499
    %1344 = vmatmul.bf16.gmra.mxu0 %v1334
    %v1345 = vpop.f32.mrf.mxu0
    %v1346 = vadd.f32 0.0, %v1345
    %v1347 = vpop.f32.mrf.mxu0
    %v1348 = vadd.f32 0.0, %v1347
    %1349 = vdwg.mxu0
    %1350 = vmatpush.bf16.msra.mxu0 %v521
    %1351 = vmatpush.bf16.msra.mxu0 %v518
    %1352 = vmatpush.bf16.msra.mxu0 %v515
    %1353 = vmatpush.bf16.msra.mxu0 %v512
    %1354 = vmatpush.bf16.msra.mxu0 %v509
    %1355 = vmatpush.bf16.msra.mxu0 %v506
    %1356 = vmatpush.bf16.msra.mxu0 %v503
    %1357 = vmatpush.bf16.msra.mxu0 %v500
    %1358 = vmatmul.bf16.gmra.mxu0 %v1334
    %v1359 = vpop.f32.mrf.mxu0
    %v1360 = vadd.f32 0.0, %v1359
    %v1361 = vpop.f32.mrf.mxu0
    %v1362 = vadd.f32 0.0, %v1361
    %1363 = vdwg.mxu0
    %1364 = vmatpush.bf16.msra.mxu0 %v522
    %1365 = vmatpush.bf16.msra.mxu0 %v519
    %1366 = vmatpush.bf16.msra.mxu0 %v516
    %1367 = vmatpush.bf16.msra.mxu0 %v513
    %1368 = vmatpush.bf16.msra.mxu0 %v510
    %1369 = vmatpush.bf16.msra.mxu0 %v507
    %1370 = vmatpush.bf16.msra.mxu0 %v504
    %1371 = vmatpush.bf16.msra.mxu0 %v501
    %1372 = vmatmul.bf16.gmra.mxu0 %v1334
    %v1373 = vpop.f32.mrf.mxu0
    %v1374 = vadd.f32 0.0, %v1373
    %v1375 = vpop.f32.mrf.mxu0
    %v1376 = vadd.f32 0.0, %v1375
    %1377 = vdwg.mxu0
    %v1378 = vadd.f32 %v1324, %v1346
    %v1379 = vadd.f32 %v1327, %v1348
    %v1380 = vxor.u32 %v1378, 2147483648
    %v1381 = vxor.u32 %v1379, 2147483648
    %v1382 = vmul.f32 %v1380, 1.442695
    %v1383 = vpow.pop %v1382
    %v1384 = vmul.f32 %v1381, 1.442695
    %v1385 = vpow.pop %v1384
    %v1386 = vadd.f32 %v1383, 1.0
    %v1387 = vadd.f32 %v1385, 1.0
    %v1388 = vrcp.pop %v1386
    %v1389 = vmul.f32 %v1386, %v1388
    %v1390 = vsub.f32 1.0, %v1389
    %v1391 = vmul.f32 %v1388, %v1390
    %v1392 = vadd.f32 %v1388, %v1391
    %vm1393 = vweird.f32 %v1386
    %vm1394 = vweird.f32 %v1388
    %vm1395 = vmor %vm1393, %vm1394
    %v1396 = vsel %vm1395, %v1388, %v1392
    %v1397 = vand.u32 2147483647, %v1386
    %vm1398 = vcmp.eq.f32.partialorder %v1397, 8.507059e+37
    %v1399 = vand.u32 %v1386, 2147483648
    %v1400 = vor.u32 1.1754944e-38, %v1399
    %v1401 = vsel %vm1398, %v1400, %v1396
    %v1402 = vmul.f32 1.0, %v1401
    %v1403 = vrcp.pop %v1387
    %v1404 = vmul.f32 %v1387, %v1403
    %v1405 = vsub.f32 1.0, %v1404
    %v1406 = vmul.f32 %v1403, %v1405
    %v1407 = vadd.f32 %v1403, %v1406
    %vm1408 = vweird.f32 %v1387
    %vm1409 = vweird.f32 %v1403
    %vm1410 = vmor %vm1408, %vm1409
    %v1411 = vsel %vm1410, %v1403, %v1407
    %v1412 = vand.u32 2147483647, %v1387
    %vm1413 = vcmp.eq.f32.partialorder %v1412, 8.507059e+37
    %v1414 = vand.u32 %v1387, 2147483648
    %v1415 = vor.u32 1.1754944e-38, %v1414
    %v1416 = vsel %vm1413, %v1415, %v1411
    %v1417 = vmul.f32 1.0, %v1416
    %v1418 = vadd.f32 %v1325, %v1360
    %v1419 = vadd.f32 %v1328, %v1362
    %v1420 = vxor.u32 %v1418, 2147483648
    %v1421 = vxor.u32 %v1419, 2147483648
    %v1422 = vmul.f32 %v1420, 1.442695
    %v1423 = vpow.pop %v1422
    %v1424 = vmul.f32 %v1421, 1.442695
    %v1425 = vpow.pop %v1424
    %v1426 = vadd.f32 %v1423, 1.0
    %v1427 = vadd.f32 %v1425, 1.0
    %v1428 = vrcp.pop %v1426
    %v1429 = vmul.f32 %v1426, %v1428
    %v1430 = vsub.f32 1.0, %v1429
    %v1431 = vmul.f32 %v1428, %v1430
    %v1432 = vadd.f32 %v1428, %v1431
    %vm1433 = vweird.f32 %v1426
    %vm1434 = vweird.f32 %v1428
    %vm1435 = vmor %vm1433, %vm1434
    %v1436 = vsel %vm1435, %v1428, %v1432
    %v1437 = vand.u32 2147483647, %v1426
    %vm1438 = vcmp.eq.f32.partialorder %v1437, 8.507059e+37
    %v1439 = vand.u32 %v1426, 2147483648
    %v1440 = vor.u32 1.1754944e-38, %v1439
    %v1441 = vsel %vm1438, %v1440, %v1436
    %v1442 = vmul.f32 1.0, %v1441
    %v1443 = vrcp.pop %v1427
    %v1444 = vmul.f32 %v1427, %v1443
    %v1445 = vsub.f32 1.0, %v1444
    %v1446 = vmul.f32 %v1443, %v1445
    %v1447 = vadd.f32 %v1443, %v1446
    %vm1448 = vweird.f32 %v1427
    %vm1449 = vweird.f32 %v1443
    %vm1450 = vmor %vm1448, %vm1449
    %v1451 = vsel %vm1450, %v1443, %v1447
    %v1452 = vand.u32 2147483647, %v1427
    %vm1453 = vcmp.eq.f32.partialorder %v1452, 8.507059e+37
    %v1454 = vand.u32 %v1427, 2147483648
    %v1455 = vor.u32 1.1754944e-38, %v1454
    %v1456 = vsel %vm1453, %v1455, %v1451
    %v1457 = vmul.f32 1.0, %v1456
    %v1458 = vadd.f32 %v1374, %v405
    %v1459 = vadd.f32 %v1376, %v405
    %v1460 = vmul.f32 %v1402, %v1458
    %v1461 = vmul.f32 %v1417, %v1459
    %v1462 = vadd.f32 %v1326, %v1460
    %v1463 = vadd.f32 %v1329, %v1461
    %v1464 = vtanh.pop %v1462
    %v1465 = vtanh.pop %v1463
    %v1466 = vsub.f32 1.0, %v1442
    %v1467 = vsub.f32 1.0, %v1457
    %v1468 = vmul.f32 %v1466, %v1464
    %v1469 = vmul.f32 %v1467, %v1465
    %v1470 = vmul.f32 %v1442, %v1314
    %v1471 = vmul.f32 %v1457, %v1315
    %v1472 = vadd.f32 %v1468, %v1470
    %v1473 = vadd.f32 %v1469, %v1471
    %v1474 = vpack.c.bf16 %v1472, %v1472
    %v1475 = vpack.c.bf16 %v1473, %v1473
    %s1476 = scalar_lea.vmem [#allocation7], 40
    %1477 = vst [vmem:[%s1476] sm:$0xf] %v1474
    %1478 = vst [vmem:[%s1476 + $0x4] sm:$0xf] %v1475
    %s1479 = smul.u32 12, 3
    %s1480 = smul.addr %s1479, 8
    %s1481 = scalar_lea.vmem [#allocation3], %s1480
    %v1482 = vld [vmem:[%s1481] sm:$0xff]
    %v1483 = vld [vmem:[%s1481 + $0x8] sm:$0xff]
    %v1484 = vld [vmem:[%s1481 + $0x10] sm:$0xff]
    %v1485 = vld [vmem:[%s1481 + $0x18] sm:$0xff]
    %v1486 = vld [vmem:[%s1481 + $0x20] sm:$0xff]
    %v1487 = vld [vmem:[%s1481 + $0x28] sm:$0xff]
    %v1490 = vunpack.c.l.b16 %v1474
    %v1491 = vunpack.c.l.b16 %v1475
    %v1492 = vpack.c.b16 %v1491, %v1490
    %1494 = vmatpush.bf16.msra.mxu0 %v520
    %1495 = vmatpush.bf16.msra.mxu0 %v517
    %1496 = vmatpush.bf16.msra.mxu0 %v514
    %1497 = vmatpush.bf16.msra.mxu0 %v511
    %1498 = vmatpush.bf16.msra.mxu0 %v508
    %1499 = vmatpush.bf16.msra.mxu0 %v505
    %1500 = vmatpush.bf16.msra.mxu0 %v502
    %1501 = vmatpush.bf16.msra.mxu0 %v499
    %1502 = vmatmul.bf16.gmra.mxu0 %v1492
    %v1503 = vpop.f32.mrf.mxu0
    %v1504 = vadd.f32 0.0, %v1503
    %v1505 = vpop.f32.mrf.mxu0
    %v1506 = vadd.f32 0.0, %v1505
    %1507 = vdwg.mxu0
    %1508 = vmatpush.bf16.msra.mxu0 %v521
    %1509 = vmatpush.bf16.msra.mxu0 %v518
    %1510 = vmatpush.bf16.msra.mxu0 %v515
    %1511 = vmatpush.bf16.msra.mxu0 %v512
    %1512 = vmatpush.bf16.msra.mxu0 %v509
    %1513 = vmatpush.bf16.msra.mxu0 %v506
    %1514 = vmatpush.bf16.msra.mxu0 %v503
    %1515 = vmatpush.bf16.msra.mxu0 %v500
    %1516 = vmatmul.bf16.gmra.mxu0 %v1492
    %v1517 = vpop.f32.mrf.mxu0
    %v1518 = vadd.f32 0.0, %v1517
    %v1519 = vpop.f32.mrf.mxu0
    %v1520 = vadd.f32 0.0, %v1519
    %1521 = vdwg.mxu0
    %1522 = vmatpush.bf16.msra.mxu0 %v522
    %1523 = vmatpush.bf16.msra.mxu0 %v519
    %1524 = vmatpush.bf16.msra.mxu0 %v516
    %1525 = vmatpush.bf16.msra.mxu0 %v513
    %1526 = vmatpush.bf16.msra.mxu0 %v510
    %1527 = vmatpush.bf16.msra.mxu0 %v507
    %1528 = vmatpush.bf16.msra.mxu0 %v504
    %1529 = vmatpush.bf16.msra.mxu0 %v501
    %1530 = vmatmul.bf16.gmra.mxu0 %v1492
    %v1531 = vpop.f32.mrf.mxu0
    %v1532 = vadd.f32 0.0, %v1531
    %v1533 = vpop.f32.mrf.mxu0
    %v1534 = vadd.f32 0.0, %v1533
    %1535 = vdwg.mxu0
    %v1536 = vadd.f32 %v1482, %v1504
    %v1537 = vadd.f32 %v1485, %v1506
    %v1538 = vxor.u32 %v1536, 2147483648
    %v1539 = vxor.u32 %v1537, 2147483648
    %v1540 = vmul.f32 %v1538, 1.442695
    %v1541 = vpow.pop %v1540
    %v1542 = vmul.f32 %v1539, 1.442695
    %v1543 = vpow.pop %v1542
    %v1544 = vadd.f32 %v1541, 1.0
    %v1545 = vadd.f32 %v1543, 1.0
    %v1546 = vrcp.pop %v1544
    %v1547 = vmul.f32 %v1544, %v1546
    %v1548 = vsub.f32 1.0, %v1547
    %v1549 = vmul.f32 %v1546, %v1548
    %v1550 = vadd.f32 %v1546, %v1549
    %vm1551 = vweird.f32 %v1544
    %vm1552 = vweird.f32 %v1546
    %vm1553 = vmor %vm1551, %vm1552
    %v1554 = vsel %vm1553, %v1546, %v1550
    %v1555 = vand.u32 2147483647, %v1544
    %vm1556 = vcmp.eq.f32.partialorder %v1555, 8.507059e+37
    %v1557 = vand.u32 %v1544, 2147483648
    %v1558 = vor.u32 1.1754944e-38, %v1557
    %v1559 = vsel %vm1556, %v1558, %v1554
    %v1560 = vmul.f32 1.0, %v1559
    %v1561 = vrcp.pop %v1545
    %v1562 = vmul.f32 %v1545, %v1561
    %v1563 = vsub.f32 1.0, %v1562
    %v1564 = vmul.f32 %v1561, %v1563
    %v1565 = vadd.f32 %v1561, %v1564
    %vm1566 = vweird.f32 %v1545
    %vm1567 = vweird.f32 %v1561
    %vm1568 = vmor %vm1566, %vm1567
    %v1569 = vsel %vm1568, %v1561, %v1565
    %v1570 = vand.u32 2147483647, %v1545
    %vm1571 = vcmp.eq.f32.partialorder %v1570, 8.507059e+37
    %v1572 = vand.u32 %v1545, 2147483648
    %v1573 = vor.u32 1.1754944e-38, %v1572
    %v1574 = vsel %vm1571, %v1573, %v1569
    %v1575 = vmul.f32 1.0, %v1574
    %v1576 = vadd.f32 %v1483, %v1518
    %v1577 = vadd.f32 %v1486, %v1520
    %v1578 = vxor.u32 %v1576, 2147483648
    %v1579 = vxor.u32 %v1577, 2147483648
    %v1580 = vmul.f32 %v1578, 1.442695
    %v1581 = vpow.pop %v1580
    %v1582 = vmul.f32 %v1579, 1.442695
    %v1583 = vpow.pop %v1582
    %v1584 = vadd.f32 %v1581, 1.0
    %v1585 = vadd.f32 %v1583, 1.0
    %v1586 = vrcp.pop %v1584
    %v1587 = vmul.f32 %v1584, %v1586
    %v1588 = vsub.f32 1.0, %v1587
    %v1589 = vmul.f32 %v1586, %v1588
    %v1590 = vadd.f32 %v1586, %v1589
    %vm1591 = vweird.f32 %v1584
    %vm1592 = vweird.f32 %v1586
    %vm1593 = vmor %vm1591, %vm1592
    %v1594 = vsel %vm1593, %v1586, %v1590
    %v1595 = vand.u32 2147483647, %v1584
    %vm1596 = vcmp.eq.f32.partialorder %v1595, 8.507059e+37
    %v1597 = vand.u32 %v1584, 2147483648
    %v1598 = vor.u32 1.1754944e-38, %v1597
    %v1599 = vsel %vm1596, %v1598, %v1594
    %v1600 = vmul.f32 1.0, %v1599
    %v1601 = vrcp.pop %v1585
    %v1602 = vmul.f32 %v1585, %v1601
    %v1603 = vsub.f32 1.0, %v1602
    %v1604 = vmul.f32 %v1601, %v1603
    %v1605 = vadd.f32 %v1601, %v1604
    %vm1606 = vweird.f32 %v1585
    %vm1607 = vweird.f32 %v1601
    %vm1608 = vmor %vm1606, %vm1607
    %v1609 = vsel %vm1608, %v1601, %v1605
    %v1610 = vand.u32 2147483647, %v1585
    %vm1611 = vcmp.eq.f32.partialorder %v1610, 8.507059e+37
    %v1612 = vand.u32 %v1585, 2147483648
    %v1613 = vor.u32 1.1754944e-38, %v1612
    %v1614 = vsel %vm1611, %v1613, %v1609
    %v1615 = vmul.f32 1.0, %v1614
    %v1616 = vadd.f32 %v1532, %v405
    %v1617 = vadd.f32 %v1534, %v405
    %v1618 = vmul.f32 %v1560, %v1616
    %v1619 = vmul.f32 %v1575, %v1617
    %v1620 = vadd.f32 %v1484, %v1618
    %v1621 = vadd.f32 %v1487, %v1619
    %v1622 = vtanh.pop %v1620
    %v1623 = vtanh.pop %v1621
    %v1624 = vsub.f32 1.0, %v1600
    %v1625 = vsub.f32 1.0, %v1615
    %v1626 = vmul.f32 %v1624, %v1622
    %v1627 = vmul.f32 %v1625, %v1623
    %v1628 = vmul.f32 %v1600, %v1472
    %v1629 = vmul.f32 %v1615, %v1473
    %v1630 = vadd.f32 %v1626, %v1628
    %v1631 = vadd.f32 %v1627, %v1629
    %v1632 = vpack.c.bf16 %v1630, %v1630
    %v1633 = vpack.c.bf16 %v1631, %v1631
    %s1634 = scalar_lea.vmem [#allocation7], 48
    %1635 = vst [vmem:[%s1634] sm:$0xf] %v1632
    %1636 = vst [vmem:[%s1634 + $0x4] sm:$0xf] %v1633
    %s1637 = smul.u32 14, 3
    %s1638 = smul.addr %s1637, 8
    %s1639 = scalar_lea.vmem [#allocation3], %s1638
    %v1640 = vld [vmem:[%s1639] sm:$0xff]
    %v1641 = vld [vmem:[%s1639 + $0x8] sm:$0xff]
    %v1642 = vld [vmem:[%s1639 + $0x10] sm:$0xff]
    %v1643 = vld [vmem:[%s1639 + $0x18] sm:$0xff]
    %v1644 = vld [vmem:[%s1639 + $0x20] sm:$0xff]
    %v1645 = vld [vmem:[%s1639 + $0x28] sm:$0xff]
    %v1648 = vunpack.c.l.b16 %v1632
    %v1649 = vunpack.c.l.b16 %v1633
    %v1650 = vpack.c.b16 %v1649, %v1648
    %1652 = vmatpush.bf16.msra.mxu0 %v520
    %1653 = vmatpush.bf16.msra.mxu0 %v517
    %1654 = vmatpush.bf16.msra.mxu0 %v514
    %1655 = vmatpush.bf16.msra.mxu0 %v511
    %1656 = vmatpush.bf16.msra.mxu0 %v508
    %1657 = vmatpush.bf16.msra.mxu0 %v505
    %1658 = vmatpush.bf16.msra.mxu0 %v502
    %1659 = vmatpush.bf16.msra.mxu0 %v499
    %1660 = vmatmul.bf16.gmra.mxu0 %v1650
    %v1661 = vpop.f32.mrf.mxu0
    %v1662 = vadd.f32 0.0, %v1661
    %v1663 = vpop.f32.mrf.mxu0
    %v1664 = vadd.f32 0.0, %v1663
    %1665 = vdwg.mxu0
    %1666 = vmatpush.bf16.msra.mxu0 %v521
    %1667 = vmatpush.bf16.msra.mxu0 %v518
    %1668 = vmatpush.bf16.msra.mxu0 %v515
    %1669 = vmatpush.bf16.msra.mxu0 %v512
    %1670 = vmatpush.bf16.msra.mxu0 %v509
    %1671 = vmatpush.bf16.msra.mxu0 %v506
    %1672 = vmatpush.bf16.msra.mxu0 %v503
    %1673 = vmatpush.bf16.msra.mxu0 %v500
    %1674 = vmatmul.bf16.gmra.mxu0 %v1650
    %v1675 = vpop.f32.mrf.mxu0
    %v1676 = vadd.f32 0.0, %v1675
    %v1677 = vpop.f32.mrf.mxu0
    %v1678 = vadd.f32 0.0, %v1677
    %1679 = vdwg.mxu0
    %1680 = vmatpush.bf16.msra.mxu0 %v522
    %1681 = vmatpush.bf16.msra.mxu0 %v519
    %1682 = vmatpush.bf16.msra.mxu0 %v516
    %1683 = vmatpush.bf16.msra.mxu0 %v513
    %1684 = vmatpush.bf16.msra.mxu0 %v510
    %1685 = vmatpush.bf16.msra.mxu0 %v507
    %1686 = vmatpush.bf16.msra.mxu0 %v504
    %1687 = vmatpush.bf16.msra.mxu0 %v501
    %1688 = vmatmul.bf16.gmra.mxu0 %v1650
    %v1689 = vpop.f32.mrf.mxu0
    %v1690 = vadd.f32 0.0, %v1689
    %v1691 = vpop.f32.mrf.mxu0
    %v1692 = vadd.f32 0.0, %v1691
    %1693 = vdwg.mxu0
    %v1694 = vadd.f32 %v1640, %v1662
    %v1695 = vadd.f32 %v1643, %v1664
    %v1696 = vxor.u32 %v1694, 2147483648
    %v1697 = vxor.u32 %v1695, 2147483648
    %v1698 = vmul.f32 %v1696, 1.442695
    %v1699 = vpow.pop %v1698
    %v1700 = vmul.f32 %v1697, 1.442695
    %v1701 = vpow.pop %v1700
    %v1702 = vadd.f32 %v1699, 1.0
    %v1703 = vadd.f32 %v1701, 1.0
    %v1704 = vrcp.pop %v1702
    %v1705 = vmul.f32 %v1702, %v1704
    %v1706 = vsub.f32 1.0, %v1705
    %v1707 = vmul.f32 %v1704, %v1706
    %v1708 = vadd.f32 %v1704, %v1707
    %vm1709 = vweird.f32 %v1702
    %vm1710 = vweird.f32 %v1704
    %vm1711 = vmor %vm1709, %vm1710
    %v1712 = vsel %vm1711, %v1704, %v1708
    %v1713 = vand.u32 2147483647, %v1702
    %vm1714 = vcmp.eq.f32.partialorder %v1713, 8.507059e+37
    %v1715 = vand.u32 %v1702, 2147483648
    %v1716 = vor.u32 1.1754944e-38, %v1715
    %v1717 = vsel %vm1714, %v1716, %v1712
    %v1718 = vmul.f32 1.0, %v1717
    %v1719 = vrcp.pop %v1703
    %v1720 = vmul.f32 %v1703, %v1719
    %v1721 = vsub.f32 1.0, %v1720
    %v1722 = vmul.f32 %v1719, %v1721
    %v1723 = vadd.f32 %v1719, %v1722
    %vm1724 = vweird.f32 %v1703
    %vm1725 = vweird.f32 %v1719
    %vm1726 = vmor %vm1724, %vm1725
    %v1727 = vsel %vm1726, %v1719, %v1723
    %v1728 = vand.u32 2147483647, %v1703
    %vm1729 = vcmp.eq.f32.partialorder %v1728, 8.507059e+37
    %v1730 = vand.u32 %v1703, 2147483648
    %v1731 = vor.u32 1.1754944e-38, %v1730
    %v1732 = vsel %vm1729, %v1731, %v1727
    %v1733 = vmul.f32 1.0, %v1732
    %v1734 = vadd.f32 %v1641, %v1676
    %v1735 = vadd.f32 %v1644, %v1678
    %v1736 = vxor.u32 %v1734, 2147483648
    %v1737 = vxor.u32 %v1735, 2147483648
    %v1738 = vmul.f32 %v1736, 1.442695
    %v1739 = vpow.pop %v1738
    %v1740 = vmul.f32 %v1737, 1.442695
    %v1741 = vpow.pop %v1740
    %v1742 = vadd.f32 %v1739, 1.0
    %v1743 = vadd.f32 %v1741, 1.0
    %v1744 = vrcp.pop %v1742
    %v1745 = vmul.f32 %v1742, %v1744
    %v1746 = vsub.f32 1.0, %v1745
    %v1747 = vmul.f32 %v1744, %v1746
    %v1748 = vadd.f32 %v1744, %v1747
    %vm1749 = vweird.f32 %v1742
    %vm1750 = vweird.f32 %v1744
    %vm1751 = vmor %vm1749, %vm1750
    %v1752 = vsel %vm1751, %v1744, %v1748
    %v1753 = vand.u32 2147483647, %v1742
    %vm1754 = vcmp.eq.f32.partialorder %v1753, 8.507059e+37
    %v1755 = vand.u32 %v1742, 2147483648
    %v1756 = vor.u32 1.1754944e-38, %v1755
    %v1757 = vsel %vm1754, %v1756, %v1752
    %v1758 = vmul.f32 1.0, %v1757
    %v1759 = vrcp.pop %v1743
    %v1760 = vmul.f32 %v1743, %v1759
    %v1761 = vsub.f32 1.0, %v1760
    %v1762 = vmul.f32 %v1759, %v1761
    %v1763 = vadd.f32 %v1759, %v1762
    %vm1764 = vweird.f32 %v1743
    %vm1765 = vweird.f32 %v1759
    %vm1766 = vmor %vm1764, %vm1765
    %v1767 = vsel %vm1766, %v1759, %v1763
    %v1768 = vand.u32 2147483647, %v1743
    %vm1769 = vcmp.eq.f32.partialorder %v1768, 8.507059e+37
    %v1770 = vand.u32 %v1743, 2147483648
    %v1771 = vor.u32 1.1754944e-38, %v1770
    %v1772 = vsel %vm1769, %v1771, %v1767
    %v1773 = vmul.f32 1.0, %v1772
    %v1774 = vadd.f32 %v1690, %v405
    %v1775 = vadd.f32 %v1692, %v405
    %v1776 = vmul.f32 %v1718, %v1774
    %v1777 = vmul.f32 %v1733, %v1775
    %v1778 = vadd.f32 %v1642, %v1776
    %v1779 = vadd.f32 %v1645, %v1777
    %v1780 = vtanh.pop %v1778
    %v1781 = vtanh.pop %v1779
    %v1782 = vsub.f32 1.0, %v1758
    %v1783 = vsub.f32 1.0, %v1773
    %v1784 = vmul.f32 %v1782, %v1780
    %v1785 = vmul.f32 %v1783, %v1781
    %v1786 = vmul.f32 %v1758, %v1630
    %v1787 = vmul.f32 %v1773, %v1631
    %v1788 = vadd.f32 %v1784, %v1786
    %v1789 = vadd.f32 %v1785, %v1787
    %v1790 = vpack.c.bf16 %v1788, %v1788
    %v1791 = vpack.c.bf16 %v1789, %v1789
    %s1792 = scalar_lea.vmem [#allocation7], 56
    %1793 = vst [vmem:[%s1792] sm:$0xf] %v1790
    %1794 = vst [vmem:[%s1792 + $0x4] sm:$0xf] %v1791
    %1795 = vst [vmem:[#allocation2] sm:$0xff] %v1788
    %1796 = vst [vmem:[#allocation2 + $0x8] sm:$0xff] %v1789
    // Predicated region
    $region30: #{tpu_custom_call.1} parent=1 // pred_check
      %p1797 = pneg %p41
    $region31: #{tpu_custom_call.1} parent=1 // pred_check_branch
      %1799 = sbr.rel (%p1797) target = $region33
    $region32: #{tpu_custom_call.1} parent=1 // pred_region
      %1800 = vst [vmem:[#allocation8] sm:$0xff] %v1788
      %1801 = vst [vmem:[#allocation8 + $0x8] sm:$0xff] %v1789
    $region33: #{tpu_custom_call.1} parent=1 // pred_fallthru
      _
    // Predicated region
    $region34: #{tpu_custom_call.1} parent=1 // pred_check
      _
    $region35: #{tpu_custom_call.1} parent=1 // pred_check_branch
      %1803 = sbr.rel (0) target = $region37
    $region36: #{tpu_custom_call.1} parent=1 // pred_region
      %1805 = vsyncadd [#allocation6], 0
      %s1806 = sshll.u32 [#allocation7], 4
      %s1807 = int_to_ptr.vmem [resolvable:$true] %s1806
      %s1808 = sshll.u32 %s5, 4
      %s1809 = int_to_ptr.hbm [resolvable:$true] %s1808
      %1814 = dma.vmem_to_hbm [thread:$0]  %s1807, 1024, %s1809, [#allocation6], 64, 64, 4
    $region37: #{tpu_custom_call.1} parent=1 // pred_fallthru
      _
    // Predicated region
    $region38: #{tpu_custom_call.1} parent=1 // pred_check
      _
    $region39: #{tpu_custom_call.1} parent=1 // pred_check_branch
      %1816 = sbr.rel (0) target = $region41
    $region40: #{tpu_custom_call.1} parent=1 // pred_region
      %1818 = vsyncadd [#allocation9], 0
      %s1819 = sshll.u32 [#allocation8], 4
      %s1820 = int_to_ptr.vmem [resolvable:$true] %s1819
      %s1821 = sshll.u32 %s6, 4
      %s1822 = int_to_ptr.hbm [resolvable:$true] %s1821
      %1827 = dma.vmem_to_hbm [thread:$0]  %s1820, 256, %s1822, [#allocation9], 128, 128, 8
    $region41: #{tpu_custom_call.1} parent=1 // pred_fallthru
      _
    // Predicated region
    $region42: #{tpu_custom_call.1} parent=1 // pred_check
      _
    $region43: #{tpu_custom_call.1} parent=1 // pred_check_branch
      %1829 = sbr.rel (0) target = $region45
    $region44: #{tpu_custom_call.1} parent=1 // pred_region
      %1831 = dma.done [#allocation6], 1024
    $region45: #{tpu_custom_call.1} parent=1 // pred_fallthru
      _
    // Predicated region
    $region46: #{tpu_custom_call.1} parent=1 // pred_check
      _
    $region47: #{tpu_custom_call.1} parent=1 // pred_check_branch
      %1833 = sbr.rel (0) target = $region49
    $region48: #{tpu_custom_call.1} parent=1 // pred_region
      %1835 = dma.done [#allocation9], 256
    $region49: #{tpu_custom_call.1} parent=1 // pred_fallthru
      _
    %1836 = vsyncpa [#allocation5], 1
    %1837 = vsyncpa [#allocation6], 1
    %1838 = vsyncpa [#allocation9], 1

</llo_original>
